<compile_context>
chip_gen: v5e
topology: v5e:2x2
jax: 0.10.0
libtpu: 0.0.40
codegen_flags: <defaults>
</compile_context>

<pallas_src>
import math
from functools import partial

import jax
import jax.numpy as jnp
from jax import lax
from jax.experimental import pallas as pl
from jax.experimental.pallas import tpu as pltpu


# ---------------------------------------------------------------------------
# Kernel 1: dilated conv via im2col + one MXU matmul, fused BN partial stats.
# ---------------------------------------------------------------------------
def conv_stats_kernel(x_ref, w_ref, conv_ref, stats_ref, col_ref, *,
                      H, W, Cin, KH, KW, dil):
    """One grid step == one image of the batch.

    x_ref:     (1, Hp, Wp, Cin)   padded image, f32, VMEM
    w_ref:     (KH*KW*Cin, Cout)  conv weight, bf16, VMEM (resident)
    conv_ref:  (1, H*W, Cout)     conv output (pre-BN), f32, VMEM
    stats_ref: (1, 2, Cout)       [sum, sum_of_squares] per channel, f32, VMEM
    col_ref:   (H*W, KH*KW*Cin)   im2col scratch, bf16, VMEM
    """
    # Build the im2col matrix once.  K-axis ordering matches the wrapper's
    # weight reshape: k = (kh*KW + kw)*Cin + ci.
    for kh in range(KH):
        for kw in range(KW):
            tap = x_ref[0, kh * dil: kh * dil + H, kw * dil: kw * dil + W, :]
            k0 = (kh * KW + kw) * Cin
            col_ref[:, k0:k0 + Cin] = tap.reshape(H * W, Cin).astype(jnp.bfloat16)

    # Single matmul, K = KH*KW*Cin, bf16 operands, f32 accumulation (MXU).
    acc = jnp.dot(col_ref[...], w_ref[...],
                  preferred_element_type=jnp.float32)          # (H*W, Cout) f32

    conv_ref[0] = acc

    # BN partial statistics fused into the conv pass (single-pass sum/sumsq).
    stats_ref[0, 0:1, :] = jnp.sum(acc, axis=0, keepdims=True)
    stats_ref[0, 1:2, :] = jnp.sum(acc * acc, axis=0, keepdims=True)


# ---------------------------------------------------------------------------
# Kernel 2: BN affine (precomputed per-lane scale/shift) + ReLU, lane-dense.
# ---------------------------------------------------------------------------
def bn_relu_kernel(y_ref, scale_ref, shift_ref, o_ref):
    o_ref[...] = jnp.maximum(y_ref[...] * scale_ref[...] + shift_ref[...], 0.0)


# ---------------------------------------------------------------------------
# Wrapper
# ---------------------------------------------------------------------------
def block_forward(x_nchw, w_oihw, gamma, beta, *, padding, dilation, eps=1e-5):
    """x_nchw: (N, Cin, H, W) f32.  Returns (N, Cout, H_out, W_out) f32."""
    N, Cin, H, W = x_nchw.shape
    Cout, _, KH, KW = w_oihw.shape

    H_out = H + 2 * padding - dilation * (KH - 1)
    W_out = W + 2 * padding - dilation * (KW - 1)
    K = KH * KW * Cin
    HW = H_out * W_out
    L = W_out * Cout                        # lane width of the dense output view

    # ---- glue: NCHW -> NHWC + spatial zero-pad (one fused XLA pass) --------
    # TODO(synk): fold the transpose/pad into the kernel via index_map halo
    # reads for very large inputs; negligible at these sizes.
    x = jnp.transpose(x_nchw, (0, 2, 3, 1)).astype(jnp.float32)
    xp = jnp.pad(x, ((0, 0), (padding, padding), (padding, padding), (0, 0)))
    Hp, Wp = xp.shape[1], xp.shape[2]

    # OIHW -> HWIO -> (K, Cout), bf16 operands for the MXU.
    w2 = jnp.transpose(w_oihw, (2, 3, 1, 0)).reshape(K, Cout).astype(jnp.bfloat16)

    kernel1 = partial(conv_stats_kernel, H=H_out, W=W_out, Cin=Cin,
                      KH=KH, KW=KW, dil=dilation)

    conv, stats = pl.pallas_call(
        kernel1,
        out_shape=(jax.ShapeDtypeStruct((N, HW, Cout), jnp.float32),
                   jax.ShapeDtypeStruct((N, 2, Cout), jnp.float32)),
        grid_spec=pltpu.PrefetchScalarGridSpec(
            num_scalar_prefetch=0,
            grid=(N,),
            in_specs=[
                pl.BlockSpec((1, Hp, Wp, Cin), lambda n: (n, 0, 0, 0)),
                pl.BlockSpec((K, Cout), lambda n: (0, 0)),
            ],
            out_specs=[
                pl.BlockSpec((1, HW, Cout), lambda n: (n, 0, 0)),
                pl.BlockSpec((1, 2, Cout), lambda n: (n, 0, 0)),
            ],
            scratch_shapes=[pltpu.VMEM((HW, K), jnp.bfloat16)],
        ),
        compiler_params=pltpu.CompilerParams(
            dimension_semantics=("parallel",),
            vmem_limit_bytes=32 * 1024 * 1024),
    )(xp, w2)

    # ---- finalize BN statistics (tiny per-channel math, plain XLA) ---------
    count = N * HW
    s = jnp.sum(stats[:, 0, :], axis=0)                    # (Cout,)
    ss = jnp.sum(stats[:, 1, :], axis=0)                   # (Cout,)
    mean = s / count
    var = jnp.maximum(ss / count - mean * mean, 0.0)       # biased variance
    inv_std = lax.rsqrt(var + eps)
    scale = gamma.astype(jnp.float32) * inv_std            # gamma folded in
    shift = beta.astype(jnp.float32) - mean * scale        # beta folded in

    # Per-lane scale/shift for the lane-dense view: lane q = w*Cout + c.
    scale_row = jnp.tile(scale, W_out).reshape(1, L)
    shift_row = jnp.tile(shift, W_out).reshape(1, L)

    # Free (bitcast) reshape: (N, H*W, Cout) -> (N*H, W*Cout), lane-dense.
    conv2d = conv.reshape(N * H_out, L)

    R = N * H_out
    TR = 8 if R % 8 == 0 else R

    out2d = pl.pallas_call(
        bn_relu_kernel,
        out_shape=jax.ShapeDtypeStruct((R, L), jnp.float32),
        grid=(R // TR,),
        in_specs=[
            pl.BlockSpec((TR, L), lambda t: (t, 0)),
            pl.BlockSpec((1, L), lambda t: (0, 0)),
            pl.BlockSpec((1, L), lambda t: (0, 0)),
        ],
        out_specs=pl.BlockSpec((TR, L), lambda t: (t, 0)),
        compiler_params=pltpu.CompilerParams(
            dimension_semantics=("parallel",),
            vmem_limit_bytes=32 * 1024 * 1024),
    )(conv2d, scale_row, shift_row)

    # (N*H, W*Cout) -> (N, H, W, Cout) -> NCHW.
    out = out2d.reshape(N, H_out, W_out, Cout)
    return jnp.transpose(out, (0, 3, 1, 2))


# ---------------------------------------------------------------------------
# Pure-JAX reference (same semantics; conv operands rounded to bf16 like the
# kernel, accumulation in f32) for correctness checking.
# ---------------------------------------------------------------------------
def block_reference(x_nchw, w_oihw, gamma, beta, *, padding, dilation, eps=1e-5):
    x = jnp.transpose(x_nchw, (0, 2, 3, 1)).astype(jnp.bfloat16).astype(jnp.float32)
    w = jnp.transpose(w_oihw, (2, 3, 1, 0)).astype(jnp.bfloat16).astype(jnp.float32)
    y = lax.conv_general_dilated(
        x, w, window_strides=(1, 1),
        padding=[(padding, padding), (padding, padding)],
        rhs_dilation=(dilation, dilation),
        dimension_numbers=("NHWC", "HWIO", "NHWC"),
        precision=lax.Precision.HIGHEST)
    mu = jnp.mean(y, axis=(0, 1, 2), keepdims=True)
    var = jnp.mean((y - mu) ** 2, axis=(0, 1, 2), keepdims=True)
    y = (y - mu) * lax.rsqrt(var + eps) * gamma + beta
    y = jnp.maximum(y, 0.0)
    return jnp.transpose(y, (0, 3, 1, 2))


if __name__ == "__main__":
    # Block(inplanes=4, planes=8, kernel_size=3, padding=2, dilation=2)
    inplanes, planes, ksize, padding, dilation = 4, 8, 3, 2, 2
    N, H, W = 2, 16, 16

    key = jax.random.PRNGKey(0)
    kx, kw = jax.random.split(key)

    x = jax.random.normal(kx, (N, inplanes, H, W), dtype=jnp.float32)

    # Kaiming-normal init (fan_in, gain=sqrt(2)), PyTorch OIHW layout.
    fan_in = inplanes * ksize * ksize
    w = jax.random.normal(kw, (planes, inplanes, ksize, ksize),
                          dtype=jnp.float32) * math.sqrt(2.0 / fan_in)
    gamma = jnp.ones((planes,), dtype=jnp.float32)   # bn.weight = 1
    beta = jnp.zeros((planes,), dtype=jnp.float32)   # bn.bias = 0

    fwd = jax.jit(block_forward, static_argnames=("padding", "dilation", "eps"))
    out = fwd(x, w, gamma, beta, padding=padding, dilation=dilation)
    out = jax.block_until_ready(out)

    ref = block_reference(x, w, gamma, beta, padding=padding, dilation=dilation)
    assert out.shape == (N, planes, H, W), out.shape
    err = float(jnp.max(jnp.abs(out - ref)))
    assert jnp.allclose(out, ref, rtol=1e-3, atol=1e-3), err

    print("KERNEL_OK")
</pallas_src>

<mosaic_0001>
module attributes {stable_mosaic.version = 11 : i64} {
  func.func @conv_stats_kernel(%arg0: i32, %arg1: memref<1x20x20x4xf32, #tpu.memory_space<vmem>>, %arg2: memref<36x8xbf16, #tpu.memory_space<vmem>>, %arg3: memref<1x256x8xf32, #tpu.memory_space<vmem>>, %arg4: memref<1x2x8xf32, #tpu.memory_space<vmem>>, %arg5: memref<256x36xbf16, #tpu.memory_space<vmem>>) attributes {dimension_semantics = [#tpu.dimension_semantics<parallel>], iteration_bounds = array<i64: 2>, scalar_prefetch = 0 : i64, scratch_operands = 1 : i64, tpu.core_type = #tpu.core_type<tc>, window_params = [{transform_indices = @transform_0, window_bounds = array<i64: 1, 20, 20, 4>}, {pipeline_mode = #tpu.pipeline_mode<synchronous>, transform_indices = @transform_1, window_bounds = array<i64: 36, 8>}, {transform_indices = @transform_2, window_bounds = array<i64: 1, 256, 8>}, {transform_indices = @transform_3, window_bounds = array<i64: 1, 2, 8>}]} {
    %c0 = arith.constant 0 : index
    %c0_0 = arith.constant 0 : index
    %c0_1 = arith.constant 0 : index
    %c0_2 = arith.constant 0 : index
    %0 = vector.load %arg1[%c0, %c0_0, %c0_1, %c0_2] : memref<1x20x20x4xf32, #tpu.memory_space<vmem>>, vector<1x16x16x4xf32>
    %1 = vector.shape_cast %0 : vector<1x16x16x4xf32> to vector<16x16x4xf32>
    %2 = vector.shape_cast %1 : vector<16x16x4xf32> to vector<256x4xf32>
    %3 = arith.truncf %2 : vector<256x4xf32> to vector<256x4xbf16>
    %c0_3 = arith.constant 0 : index
    %c0_4 = arith.constant 0 : index
    %4 = vector.load %arg5[%c0_3, %c0_4] : memref<256x36xbf16, #tpu.memory_space<vmem>>, vector<256x4xbf16>
    tpu.vector_store %arg5[%c0_3, %c0_4], %3 {strides = array<i32>} : memref<256x36xbf16, #tpu.memory_space<vmem>>, vector<256x4xbf16>,
    %c0_5 = arith.constant 0 : index
    %c0_6 = arith.constant 0 : index
    %c2 = arith.constant 2 : index
    %c0_7 = arith.constant 0 : index
    %5 = vector.load %arg1[%c0_5, %c0_6, %c2, %c0_7] : memref<1x20x20x4xf32, #tpu.memory_space<vmem>>, vector<1x16x16x4xf32>
    %6 = vector.shape_cast %5 : vector<1x16x16x4xf32> to vector<16x16x4xf32>
    %7 = vector.shape_cast %6 : vector<16x16x4xf32> to vector<256x4xf32>
    %8 = arith.truncf %7 : vector<256x4xf32> to vector<256x4xbf16>
    %c0_8 = arith.constant 0 : index
    %c4 = arith.constant 4 : index
    %9 = vector.load %arg5[%c0_8, %c4] : memref<256x36xbf16, #tpu.memory_space<vmem>>, vector<256x4xbf16>
    tpu.vector_store %arg5[%c0_8, %c4], %8 {strides = array<i32>} : memref<256x36xbf16, #tpu.memory_space<vmem>>, vector<256x4xbf16>,
    %c0_9 = arith.constant 0 : index
    %c0_10 = arith.constant 0 : index
    %c4_11 = arith.constant 4 : index
    %c0_12 = arith.constant 0 : index
    %10 = vector.load %arg1[%c0_9, %c0_10, %c4_11, %c0_12] : memref<1x20x20x4xf32, #tpu.memory_space<vmem>>, vector<1x16x16x4xf32>
    %11 = vector.shape_cast %10 : vector<1x16x16x4xf32> to vector<16x16x4xf32>
    %12 = vector.shape_cast %11 : vector<16x16x4xf32> to vector<256x4xf32>
    %13 = arith.truncf %12 : vector<256x4xf32> to vector<256x4xbf16>
    %c0_13 = arith.constant 0 : index
    %c8 = arith.constant 8 : index
    %14 = vector.load %arg5[%c0_13, %c8] : memref<256x36xbf16, #tpu.memory_space<vmem>>, vector<256x4xbf16>
    tpu.vector_store %arg5[%c0_13, %c8], %13 {strides = array<i32>} : memref<256x36xbf16, #tpu.memory_space<vmem>>, vector<256x4xbf16>,
    %c0_14 = arith.constant 0 : index
    %c2_15 = arith.constant 2 : index
    %c0_16 = arith.constant 0 : index
    %c0_17 = arith.constant 0 : index
    %15 = vector.load %arg1[%c0_14, %c2_15, %c0_16, %c0_17] : memref<1x20x20x4xf32, #tpu.memory_space<vmem>>, vector<1x16x16x4xf32>
    %16 = vector.shape_cast %15 : vector<1x16x16x4xf32> to vector<16x16x4xf32>
    %17 = vector.shape_cast %16 : vector<16x16x4xf32> to vector<256x4xf32>
    %18 = arith.truncf %17 : vector<256x4xf32> to vector<256x4xbf16>
    %c0_18 = arith.constant 0 : index
    %c12 = arith.constant 12 : index
    %19 = vector.load %arg5[%c0_18, %c12] : memref<256x36xbf16, #tpu.memory_space<vmem>>, vector<256x4xbf16>
    tpu.vector_store %arg5[%c0_18, %c12], %18 {strides = array<i32>} : memref<256x36xbf16, #tpu.memory_space<vmem>>, vector<256x4xbf16>,
    %c0_19 = arith.constant 0 : index
    %c2_20 = arith.constant 2 : index
    %c2_21 = arith.constant 2 : index
    %c0_22 = arith.constant 0 : index
    %20 = vector.load %arg1[%c0_19, %c2_20, %c2_21, %c0_22] : memref<1x20x20x4xf32, #tpu.memory_space<vmem>>, vector<1x16x16x4xf32>
    %21 = vector.shape_cast %20 : vector<1x16x16x4xf32> to vector<16x16x4xf32>
    %22 = vector.shape_cast %21 : vector<16x16x4xf32> to vector<256x4xf32>
    %23 = arith.truncf %22 : vector<256x4xf32> to vector<256x4xbf16>
    %c0_23 = arith.constant 0 : index
    %c16 = arith.constant 16 : index
    %24 = vector.load %arg5[%c0_23, %c16] : memref<256x36xbf16, #tpu.memory_space<vmem>>, vector<256x4xbf16>
    tpu.vector_store %arg5[%c0_23, %c16], %23 {strides = array<i32>} : memref<256x36xbf16, #tpu.memory_space<vmem>>, vector<256x4xbf16>,
    %c0_24 = arith.constant 0 : index
    %c2_25 = arith.constant 2 : index
    %c4_26 = arith.constant 4 : index
    %c0_27 = arith.constant 0 : index
    %25 = vector.load %arg1[%c0_24, %c2_25, %c4_26, %c0_27] : memref<1x20x20x4xf32, #tpu.memory_space<vmem>>, vector<1x16x16x4xf32>
    %26 = vector.shape_cast %25 : vector<1x16x16x4xf32> to vector<16x16x4xf32>
    %27 = vector.shape_cast %26 : vector<16x16x4xf32> to vector<256x4xf32>
    %28 = arith.truncf %27 : vector<256x4xf32> to vector<256x4xbf16>
    %c0_28 = arith.constant 0 : index
    %c20 = arith.constant 20 : index
    %29 = vector.load %arg5[%c0_28, %c20] : memref<256x36xbf16, #tpu.memory_space<vmem>>, vector<256x4xbf16>
    tpu.vector_store %arg5[%c0_28, %c20], %28 {strides = array<i32>} : memref<256x36xbf16, #tpu.memory_space<vmem>>, vector<256x4xbf16>,
    %c0_29 = arith.constant 0 : index
    %c4_30 = arith.constant 4 : index
    %c0_31 = arith.constant 0 : index
    %c0_32 = arith.constant 0 : index
    %30 = vector.load %arg1[%c0_29, %c4_30, %c0_31, %c0_32] : memref<1x20x20x4xf32, #tpu.memory_space<vmem>>, vector<1x16x16x4xf32>
    %31 = vector.shape_cast %30 : vector<1x16x16x4xf32> to vector<16x16x4xf32>
    %32 = vector.shape_cast %31 : vector<16x16x4xf32> to vector<256x4xf32>
    %33 = arith.truncf %32 : vector<256x4xf32> to vector<256x4xbf16>
    %c0_33 = arith.constant 0 : index
    %c24 = arith.constant 24 : index
    %34 = vector.load %arg5[%c0_33, %c24] : memref<256x36xbf16, #tpu.memory_space<vmem>>, vector<256x4xbf16>
    tpu.vector_store %arg5[%c0_33, %c24], %33 {strides = array<i32>} : memref<256x36xbf16, #tpu.memory_space<vmem>>, vector<256x4xbf16>,
    %c0_34 = arith.constant 0 : index
    %c4_35 = arith.constant 4 : index
    %c2_36 = arith.constant 2 : index
    %c0_37 = arith.constant 0 : index
    %35 = vector.load %arg1[%c0_34, %c4_35, %c2_36, %c0_37] : memref<1x20x20x4xf32, #tpu.memory_space<vmem>>, vector<1x16x16x4xf32>
    %36 = vector.shape_cast %35 : vector<1x16x16x4xf32> to vector<16x16x4xf32>
    %37 = vector.shape_cast %36 : vector<16x16x4xf32> to vector<256x4xf32>
    %38 = arith.truncf %37 : vector<256x4xf32> to vector<256x4xbf16>
    %c0_38 = arith.constant 0 : index
    %c28 = arith.constant 28 : index
    %39 = vector.load %arg5[%c0_38, %c28] : memref<256x36xbf16, #tpu.memory_space<vmem>>, vector<256x4xbf16>
    tpu.vector_store %arg5[%c0_38, %c28], %38 {strides = array<i32>} : memref<256x36xbf16, #tpu.memory_space<vmem>>, vector<256x4xbf16>,
    %c0_39 = arith.constant 0 : index
    %c4_40 = arith.constant 4 : index
    %c4_41 = arith.constant 4 : index
    %c0_42 = arith.constant 0 : index
    %40 = vector.load %arg1[%c0_39, %c4_40, %c4_41, %c0_42] : memref<1x20x20x4xf32, #tpu.memory_space<vmem>>, vector<1x16x16x4xf32>
    %41 = vector.shape_cast %40 : vector<1x16x16x4xf32> to vector<16x16x4xf32>
    %42 = vector.shape_cast %41 : vector<16x16x4xf32> to vector<256x4xf32>
    %43 = arith.truncf %42 : vector<256x4xf32> to vector<256x4xbf16>
    %c0_43 = arith.constant 0 : index
    %c32 = arith.constant 32 : index
    %44 = vector.load %arg5[%c0_43, %c32] : memref<256x36xbf16, #tpu.memory_space<vmem>>, vector<256x4xbf16>
    tpu.vector_store %arg5[%c0_43, %c32], %43 {strides = array<i32>} : memref<256x36xbf16, #tpu.memory_space<vmem>>, vector<256x4xbf16>,
    %c0_44 = arith.constant 0 : index
    %c0_45 = arith.constant 0 : index
    %45 = vector.load %arg5[%c0_44, %c0_45] : memref<256x36xbf16, #tpu.memory_space<vmem>>, vector<256x36xbf16>
    %c0_46 = arith.constant 0 : index
    %c0_47 = arith.constant 0 : index
    %46 = vector.load %arg2[%c0_46, %c0_47] : memref<36x8xbf16, #tpu.memory_space<vmem>>, vector<36x8xbf16>
    %cst = arith.constant dense<0.000000e+00> : vector<256x8xf32>
    %47 = tpu.matmul %45, %46, %cst {dimension_numbers = #tpu.dot_dimension_numbers<[1], [0], [0], [1], [0, 0, 1, 1], [], []>} : vector<256x36xbf16>, vector<36x8xbf16>, vector<256x8xf32> -> vector<256x8xf32>
    %c0_48 = arith.constant 0 : index
    %c0_49 = arith.constant 0 : index
    %c0_50 = arith.constant 0 : index
    %48 = vector.load %arg3[%c0_48, %c0_49, %c0_50] : memref<1x256x8xf32, #tpu.memory_space<vmem>>, vector<1x256x8xf32>
    %49 = vector.shape_cast %48 : vector<1x256x8xf32> to vector<256x8xf32>
    %50 = vector.shape_cast %47 : vector<256x8xf32> to vector<1x256x8xf32>
    tpu.vector_store %arg3[%c0_48, %c0_49, %c0_50], %50 {strides = array<i32>} : memref<1x256x8xf32, #tpu.memory_space<vmem>>, vector<1x256x8xf32>,
    %cst_51 = arith.constant dense<0.000000e+00> : vector<8xf32>
    %51 = vector.multi_reduction <add>, %47, %cst_51 [0] : vector<256x8xf32> to vector<8xf32>
    %52 = vector.shape_cast %51 : vector<8xf32> to vector<1x8xf32>
    %c0_52 = arith.constant 0 : index
    %c0_53 = arith.constant 0 : index
    %c0_54 = arith.constant 0 : index
    %53 = vector.load %arg4[%c0_52, %c0_53, %c0_54] : memref<1x2x8xf32, #tpu.memory_space<vmem>>, vector<1x1x8xf32>
    %54 = vector.shape_cast %53 : vector<1x1x8xf32> to vector<1x8xf32>
    %55 = vector.shape_cast %52 : vector<1x8xf32> to vector<1x1x8xf32>
    tpu.vector_store %arg4[%c0_52, %c0_53, %c0_54], %55 {strides = array<i32>} : memref<1x2x8xf32, #tpu.memory_space<vmem>>, vector<1x1x8xf32>,
    %56 = arith.mulf %47, %47 : vector<256x8xf32>
    %cst_55 = arith.constant dense<0.000000e+00> : vector<8xf32>
    %57 = vector.multi_reduction <add>, %56, %cst_55 [0] : vector<256x8xf32> to vector<8xf32>
    %58 = vector.shape_cast %57 : vector<8xf32> to vector<1x8xf32>
    %c0_56 = arith.constant 0 : index
    %c1 = arith.constant 1 : index
    %c0_57 = arith.constant 0 : index
    %59 = vector.load %arg4[%c0_56, %c1, %c0_57] : memref<1x2x8xf32, #tpu.memory_space<vmem>>, vector<1x1x8xf32>
    %60 = vector.shape_cast %59 : vector<1x1x8xf32> to vector<1x8xf32>
    %61 = vector.shape_cast %58 : vector<1x8xf32> to vector<1x1x8xf32>
    tpu.vector_store %arg4[%c0_56, %c1, %c0_57], %61 {strides = array<i32>} : memref<1x2x8xf32, #tpu.memory_space<vmem>>, vector<1x1x8xf32>,
    return
  }
  func.func @transform_0(%arg0: i32) -> (i32, i32, i32, i32) {
    %c0_i32 = arith.constant 0 : i32
    %c0_i32_0 = arith.constant 0 : i32
    %c0_i32_1 = arith.constant 0 : i32
    %c0_i32_2 = arith.constant 0 : i32
    return %arg0, %c0_i32, %c0_i32_0, %c0_i32_1 : i32, i32, i32, i32
  }
  func.func @transform_1(%arg0: i32) -> (i32, i32) {
    %c0_i32 = arith.constant 0 : i32
    %c0_i32_0 = arith.constant 0 : i32
    %c0_i32_1 = arith.constant 0 : i32
    return %c0_i32, %c0_i32_0 : i32, i32
  }
  func.func @transform_2(%arg0: i32) -> (i32, i32, i32) {
    %c0_i32 = arith.constant 0 : i32
    %c0_i32_0 = arith.constant 0 : i32
    %c0_i32_1 = arith.constant 0 : i32
    return %arg0, %c0_i32, %c0_i32_0 : i32, i32, i32
  }
  func.func @transform_3(%arg0: i32) -> (i32, i32, i32) {
    %c0_i32 = arith.constant 0 : i32
    %c0_i32_0 = arith.constant 0 : i32
    %c0_i32_1 = arith.constant 0 : i32
    return %arg0, %c0_i32, %c0_i32_0 : i32, i32, i32
  }
}

module attributes {stable_mosaic.version = 11 : i64} {
  func.func @bn_relu_kernel(%arg0: i32, %arg1: memref<8x128xf32, #tpu.memory_space<vmem>>, %arg2: memref<1x128xf32, #tpu.memory_space<vmem>>, %arg3: memref<1x128xf32, #tpu.memory_space<vmem>>, %arg4: memref<8x128xf32, #tpu.memory_space<vmem>>) attributes {dimension_semantics = [#tpu.dimension_semantics<parallel>], iteration_bounds = array<i64: 4>, scalar_prefetch = 0 : i64, scratch_operands = 0 : i64, tpu.core_type = #tpu.core_type<tc>, window_params = [{transform_indices = @transform_0, window_bounds = array<i64: 8, 128>}, {pipeline_mode = #tpu.pipeline_mode<synchronous>, transform_indices = @transform_1, window_bounds = array<i64: 1, 128>}, {pipeline_mode = #tpu.pipeline_mode<synchronous>, transform_indices = @transform_2, window_bounds = array<i64: 1, 128>}, {transform_indices = @transform_3, window_bounds = array<i64: 8, 128>}]} {
    %c0 = arith.constant 0 : index
    %c0_0 = arith.constant 0 : index
    %0 = vector.load %arg1[%c0, %c0_0] : memref<8x128xf32, #tpu.memory_space<vmem>>, vector<8x128xf32>
    %c0_1 = arith.constant 0 : index
    %c0_2 = arith.constant 0 : index
    %1 = vector.load %arg2[%c0_1, %c0_2] : memref<1x128xf32, #tpu.memory_space<vmem>>, vector<1x128xf32>
    %2 = vector.broadcast %1 : vector<1x128xf32> to vector<8x128xf32>
    %3 = arith.mulf %0, %2 : vector<8x128xf32>
    %c0_3 = arith.constant 0 : index
    %c0_4 = arith.constant 0 : index
    %4 = vector.load %arg3[%c0_3, %c0_4] : memref<1x128xf32, #tpu.memory_space<vmem>>, vector<1x128xf32>
    %5 = vector.broadcast %4 : vector<1x128xf32> to vector<8x128xf32>
    %6 = arith.addf %3, %5 : vector<8x128xf32>
    %cst = arith.constant 0.000000e+00 : f32
    %7 = vector.broadcast %cst : f32 to vector<8x128xf32>
    %8 = arith.maximumf %6, %7 : vector<8x128xf32>
    %c0_5 = arith.constant 0 : index
    %c0_6 = arith.constant 0 : index
    %9 = vector.load %arg4[%c0_5, %c0_6] : memref<8x128xf32, #tpu.memory_space<vmem>>, vector<8x128xf32>
    tpu.vector_store %arg4[%c0_5, %c0_6], %8 {strides = array<i32>} : memref<8x128xf32, #tpu.memory_space<vmem>>, vector<8x128xf32>,
    return
  }
  func.func @transform_0(%arg0: i32) -> (i32, i32) {
    %c0_i32 = arith.constant 0 : i32
    %c0_i32_0 = arith.constant 0 : i32
    return %arg0, %c0_i32 : i32, i32
  }
  func.func @transform_1(%arg0: i32) -> (i32, i32) {
    %c0_i32 = arith.constant 0 : i32
    %c0_i32_0 = arith.constant 0 : i32
    %c0_i32_1 = arith.constant 0 : i32
    return %c0_i32, %c0_i32_0 : i32, i32
  }
  func.func @transform_2(%arg0: i32) -> (i32, i32) {
    %c0_i32 = arith.constant 0 : i32
    %c0_i32_0 = arith.constant 0 : i32
    %c0_i32_1 = arith.constant 0 : i32
    return %c0_i32, %c0_i32_0 : i32, i32
  }
  func.func @transform_3(%arg0: i32) -> (i32, i32) {
    %c0_i32 = arith.constant 0 : i32
    %c0_i32_0 = arith.constant 0 : i32
    return %arg0, %c0_i32 : i32, i32
  }
}

</mosaic_0001>

<llo_original>
// kernel: tile.18
$region0: #{tile.18}
  #allocation0 [shape = 's32[1]{0}', space=sflag, size = 0x4, scoped, tag = 'scoped memory for tile.18']
  %s0 = inlined_call_operand.vmem [shape: f32[8], index: 0, kind: input, shape index: {}]
  %s1 = inlined_call_operand.vmem [shape: f32[16,8], index: 1, kind: output, shape index: {}]
  // Predicated region
  $region2: #{tile.18} parent=0 // pred_check
    _
  $region3: #{tile.18} parent=0 // pred_check_branch
    %3 = sbr.rel (0) target = $region5
  $region4: #{tile.18} parent=0 // pred_region
    _
  $region5: #{tile.18} parent=0 // pred_fallthru
    _
  %v4 = vld [vmem:[%s0] ss:$0 sm:$0xff]
  %5 = vst [vmem:[%s1] sm:$0xff] %v4
  %s6 = scalar_lea.vmem %s1, 8
  %7 = vst [vmem:[%s6] sm:$0xff] %v4

// kernel: tile.19
$region0: #{tile.19}
  %s0 = inlined_call_operand.vmem [shape: f32[16,8], index: 0, kind: input, shape index: {}]
  %s1 = inlined_call_operand.vmem [shape: f32[1,128], index: 1, kind: output, shape index: {}]
  $region1: #{tile.19} parent=0
    #allocation0 [shape = 'u8[4096]{0}', space=vmem, size = 0x1000, scoped, tag = 'scoped mem for output reshape']
    %v2 = vld [vmem:[%s0] sm:$0x1]
    %vm3 = vcmask 64512
    %4 = vst.msk [vmem:[#allocation0] sm:$0x1] %vm3, %v2
    %s5 = scalar_lea.vmem %s0, 15
    %v6 = vld [vmem:[%s5] sm:$0x1]
    %7 = vrot.lane.b32.xlu0 %v6, 120
    %v8 = vpop.permute.xlu0 %7
    %vm9 = vcmask 1048512
    %10 = vst.msk [vmem:[#allocation0] sm:$0x1] %vm9, %v8
    %s11 = scalar_lea.vmem %s0, 14
    %v12 = vld [vmem:[%s11] sm:$0x1]
    %13 = vrot.lane.b32.xlu0 %v12, 112
    %v14 = vpop.permute.xlu0 %13
    %vm15 = vcmask 982912
    %16 = vst.msk [vmem:[#allocation0] sm:$0x1] %vm15, %v14
    %s17 = scalar_lea.vmem %s0, 13
    %v18 = vld [vmem:[%s17] sm:$0x1]
    %19 = vrot.lane.b32.xlu0 %v18, 104
    %v20 = vpop.permute.xlu0 %19
    %vm21 = vcmask 917312
    %22 = vst.msk [vmem:[#allocation0] sm:$0x1] %vm21, %v20
    %s23 = scalar_lea.vmem %s0, 12
    %v24 = vld [vmem:[%s23] sm:$0x1]
    %25 = vrot.lane.b32.xlu0 %v24, 96
    %v26 = vpop.permute.xlu0 %25
    %vm27 = vcmask 851712
    %28 = vst.msk [vmem:[#allocation0] sm:$0x1] %vm27, %v26
    %s29 = scalar_lea.vmem %s0, 11
    %v30 = vld [vmem:[%s29] sm:$0x1]
    %31 = vrot.lane.b32.xlu0 %v30, 88
    %v32 = vpop.permute.xlu0 %31
    %vm33 = vcmask 786112
    %34 = vst.msk [vmem:[#allocation0] sm:$0x1] %vm33, %v32
    %s35 = scalar_lea.vmem %s0, 10
    %v36 = vld [vmem:[%s35] sm:$0x1]
    %37 = vrot.lane.b32.xlu0 %v36, 80
    %v38 = vpop.permute.xlu0 %37
    %vm39 = vcmask 720512
    %40 = vst.msk [vmem:[#allocation0] sm:$0x1] %vm39, %v38
    %s41 = scalar_lea.vmem %s0, 9
    %v42 = vld [vmem:[%s41] sm:$0x1]
    %43 = vrot.lane.b32.xlu0 %v42, 72
    %v44 = vpop.permute.xlu0 %43
    %vm45 = vcmask 654912
    %46 = vst.msk [vmem:[#allocation0] sm:$0x1] %vm45, %v44
    %s47 = scalar_lea.vmem %s0, 8
    %v48 = vld [vmem:[%s47] sm:$0x1]
    %49 = vrot.lane.b32.xlu0 %v48, 64
    %v50 = vpop.permute.xlu0 %49
    %vm51 = vcmask 589312
    %52 = vst.msk [vmem:[#allocation0] sm:$0x1] %vm51, %v50
    %s53 = scalar_lea.vmem %s0, 7
    %v54 = vld [vmem:[%s53] sm:$0x1]
    %55 = vrot.lane.b32.xlu0 %v54, 56
    %v56 = vpop.permute.xlu0 %55
    %vm57 = vcmask 523712
    %58 = vst.msk [vmem:[#allocation0] sm:$0x1] %vm57, %v56
    %s59 = scalar_lea.vmem %s0, 6
    %v60 = vld [vmem:[%s59] sm:$0x1]
    %61 = vrot.lane.b32.xlu0 %v60, 48
    %v62 = vpop.permute.xlu0 %61
    %vm63 = vcmask 458112
    %64 = vst.msk [vmem:[#allocation0] sm:$0x1] %vm63, %v62
    %s65 = scalar_lea.vmem %s0, 5
    %v66 = vld [vmem:[%s65] sm:$0x1]
    %67 = vrot.lane.b32.xlu0 %v66, 40
    %v68 = vpop.permute.xlu0 %67
    %vm69 = vcmask 392512
    %70 = vst.msk [vmem:[#allocation0] sm:$0x1] %vm69, %v68
    %s71 = scalar_lea.vmem %s0, 4
    %v72 = vld [vmem:[%s71] sm:$0x1]
    %73 = vrot.lane.b32.xlu0 %v72, 32
    %v74 = vpop.permute.xlu0 %73
    %vm75 = vcmask 326912
    %76 = vst.msk [vmem:[#allocation0] sm:$0x1] %vm75, %v74
    %s77 = scalar_lea.vmem %s0, 3
    %v78 = vld [vmem:[%s77] sm:$0x1]
    %79 = vrot.lane.b32.xlu0 %v78, 24
    %v80 = vpop.permute.xlu0 %79
    %vm81 = vcmask 261312
    %82 = vst.msk [vmem:[#allocation0] sm:$0x1] %vm81, %v80
    %s83 = scalar_lea.vmem %s0, 2
    %v84 = vld [vmem:[%s83] sm:$0x1]
    %85 = vrot.lane.b32.xlu0 %v84, 16
    %v86 = vpop.permute.xlu0 %85
    %vm87 = vcmask 195712
    %88 = vst.msk [vmem:[#allocation0] sm:$0x1] %vm87, %v86
    %s89 = scalar_lea.vmem %s0, 1
    %v90 = vld [vmem:[%s89] sm:$0x1]
    %91 = vrot.lane.b32.xlu0 %v90, 8
    %v92 = vpop.permute.xlu0 %91
    %vm93 = vcmask 130112
    %94 = vst.msk [vmem:[#allocation0] sm:$0x1] %vm93, %v92
    %s96 = ssub.s32 2, 1
    %v97 = vld [vmem:[#allocation0] sm:%s96]
    %s99 = ssub.s32 2, 1
    %100 = vst [vmem:[%s1] sm:%s99] %v97

// kernel: block_forward.3
$region0: #{block_forward.3}
  #allocation0 [shape = 'u32[]', space=smem, size = 0x4, offset = 0x4, fixed_abs, tag = 'smem constant byte address 0x4 - core index']
  #allocation1 [shape = 'u32[72,128]{1,0:T(1,128)}', space=vmem, size = 0x9000, scoped, tag = 'internal scratch']
  %s0 = inlined_call_operand.vmem [shape: f32[32,128], index: 0, kind: input, shape index: {}]
  %s1 = inlined_call_operand.vmem [shape: f32[1,128], index: 1, kind: input, shape index: {}]
  %s2 = inlined_call_operand.vmem [shape: f32[1,128], index: 2, kind: input, shape index: {}]
  %s3 = inlined_call_operand.vmem [shape: f32[32,128], index: 3, kind: output, shape index: {}]
  %s4 = sld [smem:[#allocation0]]
  $region45: #{block_forward.3} parent=0
    _
  %s6 = ssub.s32 1, %s4
  %s7 = scalar_select 0, %s6, %s4
  loop: start=0, step=1, limit=6
  $region2: #{block_forward.3} parent=0 // loop_pre_header
    _
  $region3: #{block_forward.3} parent=0 // loop_header
    %s9 = sphi 0, %s13
    %p10 = scmp.ge.s32.totalorder %s9, 6
    %s19 = sphi 0, %s21
    %s22 = sphi 0, %s19
    %s23 = sphi 0, %s22
    %s39 = sphi 0, %s23
    %s43 = sphi 0, %s43
    %s45 = sphi 0, %s43
    %s46 = sphi 0, %s45
    %s60 = sphi 0, %s46
    %s64 = sphi 0, %s64
    %s66 = sphi 0, %s64
    %s67 = sphi 0, %s66
    %s81 = sphi 0, %s67
    %s87 = sphi 0, %s89
    %s90 = sphi 0, %s87
    %s91 = sphi 0, %s90
    %s107 = sphi 0, %s91
  $region4: #{block_forward.3} parent=0 // loop_header_branch
    %12 = sbr.rel (%p10) target = $region8
  $region5: #{block_forward.3} parent=0 // loop_body
    %s14 = ssub.s32 %s9, 1
    %s15 = ssub.s32 %s9, 2
    %s16 = sadd.s32 %s9, 1
    %s17 = ssub.s32 %s9, %s16
    %p18 = scmp.eq.s32.totalorder %s17, 0
    %s20 = sadd.s32 %s19, 1
    %s21 = scalar_select %p18, %s19, %s20
    %p24 = pneg %p18
    %p25 = scmp.eq.s32.totalorder %s9, 3
    %p26 = por %p24, %p25
    %p27 = scmp.ne.s32.totalorder %s19, %s22
    %p28 = scmp.eq.s32.totalorder %s9, 0
    %p29 = por %p27, %p28
    %p30 = scmp.ne.s32.totalorder %s19, %s22
    %p31 = scmp.eq.s32.totalorder %s14, 3
    %p32 = por %p30, %p31
    %p33 = scmp.ne.s32.totalorder %s22, %s23
    %p34 = scmp.eq.s32.totalorder %s14, 0
    %p35 = por %p33, %p34
    %p36 = scmp.ne.s32.totalorder %s22, %s23
    %p37 = scmp.eq.s32.totalorder %s15, 3
    %p38 = por %p36, %p37
    %p40 = scmp.ne.s32.totalorder %s23, %s39
    %p41 = scmp.eq.s32.totalorder %s15, 0
    %p42 = por %p40, %p41
    %s44 = sadd.s32 %s43, 1
    %p47 = scmp.eq.s32.totalorder %s9, 3
    %p48 = scmp.ne.s32.totalorder %s43, %s45
    %p49 = scmp.eq.s32.totalorder %s9, 0
    %p50 = por %p48, %p49
    %p51 = scmp.ne.s32.totalorder %s43, %s45
    %p52 = scmp.eq.s32.totalorder %s14, 3
    %p53 = por %p51, %p52
    %p54 = scmp.ne.s32.totalorder %s45, %s46
    %p55 = scmp.eq.s32.totalorder %s14, 0
    %p56 = por %p54, %p55
    %p57 = scmp.ne.s32.totalorder %s45, %s46
    %p58 = scmp.eq.s32.totalorder %s15, 3
    %p59 = por %p57, %p58
    %p61 = scmp.ne.s32.totalorder %s46, %s60
    %p62 = scmp.eq.s32.totalorder %s15, 0
    %p63 = por %p61, %p62
    %s65 = sadd.s32 %s64, 1
    %p68 = scmp.eq.s32.totalorder %s9, 3
    %p69 = scmp.ne.s32.totalorder %s64, %s66
    %p70 = scmp.eq.s32.totalorder %s9, 0
    %p71 = por %p69, %p70
    %p72 = scmp.ne.s32.totalorder %s64, %s66
    %p73 = scmp.eq.s32.totalorder %s14, 3
    %p74 = por %p72, %p73
    %p75 = scmp.ne.s32.totalorder %s66, %s67
    %p76 = scmp.eq.s32.totalorder %s14, 0
    %p77 = por %p75, %p76
    %p78 = scmp.ne.s32.totalorder %s66, %s67
    %p79 = scmp.eq.s32.totalorder %s15, 3
    %p80 = por %p78, %p79
    %p82 = scmp.ne.s32.totalorder %s67, %s81
    %p83 = scmp.eq.s32.totalorder %s15, 0
    %p84 = por %p82, %p83
    %s85 = ssub.s32 %s9, %s16
    %p86 = scmp.eq.s32.totalorder %s85, 0
    %s88 = sadd.s32 %s87, 1
    %s89 = scalar_select %p86, %s87, %s88
    %p92 = pneg %p86
    %p93 = scmp.eq.s32.totalorder %s9, 3
    %p94 = por %p92, %p93
    %p95 = scmp.ne.s32.totalorder %s87, %s90
    %p96 = scmp.eq.s32.totalorder %s9, 0
    %p97 = por %p95, %p96
    %p98 = scmp.ne.s32.totalorder %s87, %s90
    %p99 = scmp.eq.s32.totalorder %s14, 3
    %p100 = por %p98, %p99
    %p101 = scmp.ne.s32.totalorder %s90, %s91
    %p102 = scmp.eq.s32.totalorder %s14, 0
    %p103 = por %p101, %p102
    %p104 = scmp.ne.s32.totalorder %s90, %s91
    %p105 = scmp.eq.s32.totalorder %s15, 3
    %p106 = por %p104, %p105
    %p108 = scmp.ne.s32.totalorder %s91, %s107
    %p109 = scmp.eq.s32.totalorder %s15, 0
    %p110 = por %p108, %p109
    %p111 = scmp.le.s32.totalorder 1, %s9
    %p112 = scmp.lt.s32.totalorder %s9, 5
    %p113 = pnand %p111, %p112
    %p114 = pneg %p113
    // Predicated region
    $region9: #{block_forward.3} parent=5 // pred_check
      _
    $region10: #{block_forward.3} parent=5 // pred_check_branch
      %116 = sbr.rel (%p113) target = $region12
    $region11: #{block_forward.3} parent=5 // pred_region
      %s117 = ssub.s32 %s9, 1
      // Predicated region
      $region13: #{block_forward.3} parent=11 // pred_check
        %p118 = pneg %p56
      $region14: #{block_forward.3} parent=11 // pred_check_branch
        %120 = sbr.rel (%p118) target = $region16
      $region15: #{block_forward.3} parent=11 // pred_region
        _
      $region16: #{block_forward.3} parent=11 // pred_fallthru
        _
      // Predicated region
      $region17: #{block_forward.3} parent=11 // pred_check
        %p121 = pneg %p77
      $region18: #{block_forward.3} parent=11 // pred_check_branch
        %123 = sbr.rel (%p121) target = $region20
      $region19: #{block_forward.3} parent=11 // pred_region
        _
      $region20: #{block_forward.3} parent=11 // pred_fallthru
        _
    $region12: #{block_forward.3} parent=5 // pred_fallthru
      _
    %p124 = scmp.lt.s32.totalorder %s9, 4
    // Predicated region
    $region21: #{block_forward.3} parent=5 // pred_check
      %p125 = pneg %p124
    $region22: #{block_forward.3} parent=5 // pred_check_branch
      %127 = sbr.rel (%p125) target = $region24
    $region23: #{block_forward.3} parent=5 // pred_region
      // Predicated region
      $region25: #{block_forward.3} parent=23 // pred_check
        %p128 = pneg %p29
      $region26: #{block_forward.3} parent=23 // pred_check_branch
        %130 = sbr.rel (%p128) target = $region28
      $region27: #{block_forward.3} parent=23 // pred_region
        %p131 = scmp.lt.s32.totalorder %s9, 3
        %s132 = scalar_select %p131, %s9, 3
        %s133 = smul.addr %s132, 8
        %s134 = scalar_lea.vmem %s0, %s133
      $region28: #{block_forward.3} parent=23 // pred_fallthru
        _
    $region24: #{block_forward.3} parent=5 // pred_fallthru
      _
    %p135 = scmp.le.s32.totalorder 1, %s9
    %p136 = scmp.lt.s32.totalorder %s9, 5
    %p137 = pnand %p135, %p136
    %p138 = pneg %p137
    // Predicated region
    $region29: #{block_forward.3} parent=5 // pred_check
      _
    $region30: #{block_forward.3} parent=5 // pred_check_branch
      %140 = sbr.rel (%p137) target = $region32
    $region31: #{block_forward.3} parent=5 // pred_region
      %s141 = ssub.s32 %s9, 1
      %p142 = scmp.lt.s32.totalorder %s14, 3
      %s143 = scalar_select %p142, %s14, 3
      %s144 = smul.addr %s143, 8
      %s145 = scalar_lea.vmem %s0, %s144
      %p146 = pneg %p35
      %p147 = pneg %p32
      %p148 = pneg %p56
      %p149 = pneg %p53
      %p150 = pneg %p77
      %p151 = pneg %p74
      %p152 = pneg %p103
      %p153 = pneg %p100
      %p154 = scmp.lt.s32.totalorder %s14, 3
      %s155 = scalar_select %p154, %s14, 3
      %s156 = smul.addr %s155, 8
      %s157 = scalar_lea.vmem %s3, %s156
      %p158 = scmp.lt.s32.totalorder %s14, 3
      %s159 = scalar_select %p158, %s14, 3
      %s160 = smul.addr %s159, 8
      %s161 = scalar_lea.vmem %s0, %s160
      %p162 = scmp.lt.s32.totalorder %s14, 3
      %s163 = scalar_select %p162, %s14, 3
      %s164 = smul.addr %s163, 8
      %s165 = scalar_lea.vmem %s3, %s164
      %v166 = vld [vmem:[%s161] sm:$0xff]
      %v167 = vld [vmem:[%s1] sm:$0x1]
      %v169 = vperm.slane %v167, 0
      %v171 = vmul.f32 %v166, %v169
      %v172 = vld [vmem:[%s2] sm:$0x1]
      %v174 = vperm.slane %v172, 0
      %v176 = vadd.f32 %v171, %v174
      %v177 = vmax.f32 %v176, 0.0
      %178 = vst [vmem:[%s165] sm:$0xff] %v177
      %p179 = scmp.lt.s32.totalorder %s14, 3
      %s180 = scalar_select %p179, %s14, 3
      %s181 = smul.addr %s180, 8
      %s182 = scalar_lea.vmem %s3, %s181
      // Predicated region
      $region33: #{block_forward.3} parent=31 // pred_check
        %p183 = pneg %p100
      $region34: #{block_forward.3} parent=31 // pred_check_branch
        %185 = sbr.rel (%p183) target = $region36
      $region35: #{block_forward.3} parent=31 // pred_region
        _
      $region36: #{block_forward.3} parent=31 // pred_fallthru
        _
    $region32: #{block_forward.3} parent=5 // pred_fallthru
      _
    %p186 = scmp.le.s32.totalorder 2, %s9
    // Predicated region
    $region37: #{block_forward.3} parent=5 // pred_check
      %p187 = pneg %p186
    $region38: #{block_forward.3} parent=5 // pred_check_branch
      %189 = sbr.rel (%p187) target = $region40
    $region39: #{block_forward.3} parent=5 // pred_region
      %s190 = ssub.s32 %s9, 2
      // Predicated region
      $region41: #{block_forward.3} parent=39 // pred_check
        %p191 = pneg %p106
      $region42: #{block_forward.3} parent=39 // pred_check_branch
        %193 = sbr.rel (%p191) target = $region44
      $region43: #{block_forward.3} parent=39 // pred_region
        %p194 = scmp.lt.s32.totalorder %s15, 3
        %s195 = scalar_select %p194, %s15, 3
        %s196 = smul.addr %s195, 8
        %s197 = scalar_lea.vmem %s3, %s196
      $region44: #{block_forward.3} parent=39 // pred_fallthru
        _
    $region40: #{block_forward.3} parent=5 // pred_fallthru
      _
  $region6: #{block_forward.3} parent=0 // loop_footer
    %s13 = sadd.s32 1, %s9
  $region7: #{block_forward.3} parent=0 // loop_footer_branch
    %8 = sbr.rel target = $region3
  $region8: #{block_forward.3} parent=0 // loop_exit
    _

// kernel: block_forward.2
$region0: #{block_forward.2}
  #allocation0 [shape = 'u32[]', space=smem, size = 0x4, offset = 0x4, fixed_abs, tag = 'smem constant byte address 0x4 - core index']
  #allocation1 [shape = 'u32[72,128]{1,0:T(1,128)}', space=vmem, size = 0x9000, scoped, tag = 'internal scratch']
  #allocation2 [shape = 'bf16[256,36]{1,0:T(8,128)(2,1)}', space=vmem, size = 0x10000, scoped, tag = 'scratch operand']
  %s0 = inlined_call_operand.vmem [shape: f32[2,20,20,4], index: 0, kind: input, shape index: {}]
  %s1 = inlined_call_operand.vmem [shape: bf16[36,8], index: 1, kind: input, shape index: {}]
  %s2 = inlined_call_operand.vmem [shape: f32[2,256,8], index: 2, kind: output, shape index: {0}]
  %s3 = inlined_call_operand.vmem [shape: f32[2,2,8], index: 3, kind: output, shape index: {1}]
  %4 = xla_tuple %s2, %s3
  %s5 = sld [smem:[#allocation0]]
  $region49: #{block_forward.2} parent=0
    _
  %s7 = ssub.s32 1, %s5
  %s8 = scalar_select 0, %s7, %s5
  loop: start=0, step=1, limit=4
  $region2: #{block_forward.2} parent=0 // loop_pre_header
    _
  $region3: #{block_forward.2} parent=0 // loop_header
    %s10 = sphi 0, %s14
    %p11 = scmp.ge.s32.totalorder %s10, 4
    %s20 = sphi 0, %s22
    %s23 = sphi 0, %s20
    %s24 = sphi 0, %s23
    %s40 = sphi 0, %s24
    %s44 = sphi 0, %s44
    %s46 = sphi 0, %s44
    %s47 = sphi 0, %s46
    %s61 = sphi 0, %s47
    %s67 = sphi 0, %s69
    %s70 = sphi 0, %s67
    %s71 = sphi 0, %s70
    %s87 = sphi 0, %s71
    %s93 = sphi 0, %s95
    %s96 = sphi 0, %s93
    %s97 = sphi 0, %s96
    %s113 = sphi 0, %s97
  $region4: #{block_forward.2} parent=0 // loop_header_branch
    %13 = sbr.rel (%p11) target = $region8
  $region5: #{block_forward.2} parent=0 // loop_body
    %s15 = ssub.s32 %s10, 1
    %s16 = ssub.s32 %s10, 2
    %s17 = sadd.s32 %s10, 1
    %s18 = ssub.s32 %s10, %s17
    %p19 = scmp.eq.s32.totalorder %s18, 0
    %s21 = sadd.s32 %s20, 1
    %s22 = scalar_select %p19, %s20, %s21
    %p25 = pneg %p19
    %p26 = scmp.eq.s32.totalorder %s10, 1
    %p27 = por %p25, %p26
    %p28 = scmp.ne.s32.totalorder %s20, %s23
    %p29 = scmp.eq.s32.totalorder %s10, 0
    %p30 = por %p28, %p29
    %p31 = scmp.ne.s32.totalorder %s20, %s23
    %p32 = scmp.eq.s32.totalorder %s15, 1
    %p33 = por %p31, %p32
    %p34 = scmp.ne.s32.totalorder %s23, %s24
    %p35 = scmp.eq.s32.totalorder %s15, 0
    %p36 = por %p34, %p35
    %p37 = scmp.ne.s32.totalorder %s23, %s24
    %p38 = scmp.eq.s32.totalorder %s16, 1
    %p39 = por %p37, %p38
    %p41 = scmp.ne.s32.totalorder %s24, %s40
    %p42 = scmp.eq.s32.totalorder %s16, 0
    %p43 = por %p41, %p42
    %s45 = sadd.s32 %s44, 1
    %p48 = scmp.eq.s32.totalorder %s10, 1
    %p49 = scmp.ne.s32.totalorder %s44, %s46
    %p50 = scmp.eq.s32.totalorder %s10, 0
    %p51 = por %p49, %p50
    %p52 = scmp.ne.s32.totalorder %s44, %s46
    %p53 = scmp.eq.s32.totalorder %s15, 1
    %p54 = por %p52, %p53
    %p55 = scmp.ne.s32.totalorder %s46, %s47
    %p56 = scmp.eq.s32.totalorder %s15, 0
    %p57 = por %p55, %p56
    %p58 = scmp.ne.s32.totalorder %s46, %s47
    %p59 = scmp.eq.s32.totalorder %s16, 1
    %p60 = por %p58, %p59
    %p62 = scmp.ne.s32.totalorder %s47, %s61
    %p63 = scmp.eq.s32.totalorder %s16, 0
    %p64 = por %p62, %p63
    %s65 = ssub.s32 %s10, %s17
    %p66 = scmp.eq.s32.totalorder %s65, 0
    %s68 = sadd.s32 %s67, 1
    %s69 = scalar_select %p66, %s67, %s68
    %p72 = pneg %p66
    %p73 = scmp.eq.s32.totalorder %s10, 1
    %p74 = por %p72, %p73
    %p75 = scmp.ne.s32.totalorder %s67, %s70
    %p76 = scmp.eq.s32.totalorder %s10, 0
    %p77 = por %p75, %p76
    %p78 = scmp.ne.s32.totalorder %s67, %s70
    %p79 = scmp.eq.s32.totalorder %s15, 1
    %p80 = por %p78, %p79
    %p81 = scmp.ne.s32.totalorder %s70, %s71
    %p82 = scmp.eq.s32.totalorder %s15, 0
    %p83 = por %p81, %p82
    %p84 = scmp.ne.s32.totalorder %s70, %s71
    %p85 = scmp.eq.s32.totalorder %s16, 1
    %p86 = por %p84, %p85
    %p88 = scmp.ne.s32.totalorder %s71, %s87
    %p89 = scmp.eq.s32.totalorder %s16, 0
    %p90 = por %p88, %p89
    %s91 = ssub.s32 %s10, %s17
    %p92 = scmp.eq.s32.totalorder %s91, 0
    %s94 = sadd.s32 %s93, 1
    %s95 = scalar_select %p92, %s93, %s94
    %p98 = pneg %p92
    %p99 = scmp.eq.s32.totalorder %s10, 1
    %p100 = por %p98, %p99
    %p101 = scmp.ne.s32.totalorder %s93, %s96
    %p102 = scmp.eq.s32.totalorder %s10, 0
    %p103 = por %p101, %p102
    %p104 = scmp.ne.s32.totalorder %s93, %s96
    %p105 = scmp.eq.s32.totalorder %s15, 1
    %p106 = por %p104, %p105
    %p107 = scmp.ne.s32.totalorder %s96, %s97
    %p108 = scmp.eq.s32.totalorder %s15, 0
    %p109 = por %p107, %p108
    %p110 = scmp.ne.s32.totalorder %s96, %s97
    %p111 = scmp.eq.s32.totalorder %s16, 1
    %p112 = por %p110, %p111
    %p114 = scmp.ne.s32.totalorder %s97, %s113
    %p115 = scmp.eq.s32.totalorder %s16, 0
    %p116 = por %p114, %p115
    %p117 = scmp.le.s32.totalorder 1, %s10
    %p118 = scmp.lt.s32.totalorder %s10, 3
    %p119 = pnand %p117, %p118
    %p120 = pneg %p119
    // Predicated region
    $region9: #{block_forward.2} parent=5 // pred_check
      _
    $region10: #{block_forward.2} parent=5 // pred_check_branch
      %122 = sbr.rel (%p119) target = $region12
    $region11: #{block_forward.2} parent=5 // pred_region
      %s123 = ssub.s32 %s10, 1
      // Predicated region
      $region13: #{block_forward.2} parent=11 // pred_check
        %p124 = pneg %p57
      $region14: #{block_forward.2} parent=11 // pred_check_branch
        %126 = sbr.rel (%p124) target = $region16
      $region15: #{block_forward.2} parent=11 // pred_region
        _
      $region16: #{block_forward.2} parent=11 // pred_fallthru
        _
    $region12: #{block_forward.2} parent=5 // pred_fallthru
      _
    %p127 = scmp.lt.s32.totalorder %s10, 2
    // Predicated region
    $region17: #{block_forward.2} parent=5 // pred_check
      %p128 = pneg %p127
    $region18: #{block_forward.2} parent=5 // pred_check_branch
      %130 = sbr.rel (%p128) target = $region20
    $region19: #{block_forward.2} parent=5 // pred_region
      // Predicated region
      $region21: #{block_forward.2} parent=19 // pred_check
        %p131 = pneg %p30
      $region22: #{block_forward.2} parent=19 // pred_check_branch
        %133 = sbr.rel (%p131) target = $region24
      $region23: #{block_forward.2} parent=19 // pred_region
        %p134 = scmp.lt.s32.totalorder %s10, 1
        %s135 = scalar_select %p134, %s10, 1
        %s136 = smul.addr %s135, 60
        %s137 = smul.addr %s136, 8
        %s138 = scalar_lea.vmem %s0, %s137
      $region24: #{block_forward.2} parent=19 // pred_fallthru
        _
    $region20: #{block_forward.2} parent=5 // pred_fallthru
      _
    %p139 = scmp.le.s32.totalorder 1, %s10
    %p140 = scmp.lt.s32.totalorder %s10, 3
    %p141 = pnand %p139, %p140
    %p142 = pneg %p141
    // Predicated region
    $region25: #{block_forward.2} parent=5 // pred_check
      _
    $region26: #{block_forward.2} parent=5 // pred_check_branch
      %144 = sbr.rel (%p141) target = $region28
    $region27: #{block_forward.2} parent=5 // pred_region
      %s145 = ssub.s32 %s10, 1
      %p146 = scmp.lt.s32.totalorder %s15, 1
      %s147 = scalar_select %p146, %s15, 1
      %s148 = smul.addr %s147, 60
      %s149 = smul.addr %s148, 8
      %s150 = scalar_lea.vmem %s0, %s149
      %p151 = pneg %p36
      %p152 = pneg %p33
      %p153 = pneg %p57
      %p154 = pneg %p54
      %p155 = pneg %p83
      %p156 = pneg %p80
      %p157 = scmp.lt.s32.totalorder %s15, 1
      %s158 = scalar_select %p157, %s15, 1
      %s159 = smul.addr %s158, 32
      %s160 = smul.addr %s159, 8
      %s161 = scalar_lea.vmem %s2, %s160
      %p162 = pneg %p109
      %p163 = pneg %p106
      %p164 = scmp.lt.s32.totalorder %s15, 1
      %s165 = scalar_select %p164, %s15, 1
      %s166 = smul.addr %s165, 2
      %s167 = scalar_lea.vmem %s3, %s166
      %p168 = scmp.lt.s32.totalorder %s15, 1
      %s169 = scalar_select %p168, %s15, 1
      %s170 = smul.addr %s169, 60
      %s171 = smul.addr %s170, 8
      %s172 = scalar_lea.vmem %s0, %s171
      %p173 = scmp.lt.s32.totalorder %s15, 1
      %s174 = scalar_select %p173, %s15, 1
      %s175 = smul.addr %s174, 32
      %s176 = smul.addr %s175, 8
      %s177 = scalar_lea.vmem %s2, %s176
      %p178 = scmp.lt.s32.totalorder %s15, 1
      %s179 = scalar_select %p178, %s15, 1
      %s180 = smul.addr %s179, 2
      %s181 = scalar_lea.vmem %s3, %s180
      %v183 = vld [vmem:[%s172] sm:$0xff]
      %v184 = vld [vmem:[%s172 + $0x8] sm:$0xff]
      %v185 = vld [vmem:[%s172 + $0x18] sm:$0xff]
      %v186 = vld [vmem:[%s172 + $0x20] sm:$0xff]
      %v187 = vld [vmem:[%s172 + $0x30] sm:$0xff]
      %v188 = vld [vmem:[%s172 + $0x38] sm:$0xff]
      %v189 = vld [vmem:[%s172 + $0x48] sm:$0xff]
      %v190 = vld [vmem:[%s172 + $0x50] sm:$0xff]
      %v191 = vld [vmem:[%s172 + $0x60] sm:$0xff]
      %v192 = vld [vmem:[%s172 + $0x68] sm:$0xff]
      %v193 = vld [vmem:[%s172 + $0x78] sm:$0xff]
      %v194 = vld [vmem:[%s172 + $0x80] sm:$0xff]
      %v195 = vld [vmem:[%s172 + $0x90] sm:$0xff]
      %v196 = vld [vmem:[%s172 + $0x98] sm:$0xff]
      %v197 = vld [vmem:[%s172 + $0xa8] sm:$0xff]
      %v198 = vld [vmem:[%s172 + $0xb0] sm:$0xff]
      %v199 = vld [vmem:[%s172 + $0xc0] sm:$0xff]
      %v200 = vld [vmem:[%s172 + $0xc8] sm:$0xff]
      %v201 = vld [vmem:[%s172 + $0xd8] sm:$0xff]
      %v202 = vld [vmem:[%s172 + $0xe0] sm:$0xff]
      %v203 = vld [vmem:[%s172 + $0xf0] sm:$0xff]
      %v204 = vld [vmem:[%s172 + $0xf8] sm:$0xff]
      %v205 = vld [vmem:[%s172 + $0x108] sm:$0xff]
      %v206 = vld [vmem:[%s172 + $0x110] sm:$0xff]
      %v207 = vld [vmem:[%s172 + $0x120] sm:$0xff]
      %v208 = vld [vmem:[%s172 + $0x128] sm:$0xff]
      %v209 = vld [vmem:[%s172 + $0x138] sm:$0xff]
      %v210 = vld [vmem:[%s172 + $0x140] sm:$0xff]
      %v211 = vld [vmem:[%s172 + $0x150] sm:$0xff]
      %v212 = vld [vmem:[%s172 + $0x158] sm:$0xff]
      %v213 = vld [vmem:[%s172 + $0x168] sm:$0xff]
      %v214 = vld [vmem:[%s172 + $0x170] sm:$0xff]
      %v215 = vpack.c.bf16 %v183, %v183
      %v216 = vpack.c.bf16 %v184, %v184
      %v217 = vpack.c.bf16 %v185, %v185
      %v218 = vpack.c.bf16 %v186, %v186
      %v219 = vpack.c.bf16 %v187, %v187
      %v220 = vpack.c.bf16 %v188, %v188
      %v221 = vpack.c.bf16 %v189, %v189
      %v222 = vpack.c.bf16 %v190, %v190
      %v223 = vpack.c.bf16 %v191, %v191
      %v224 = vpack.c.bf16 %v192, %v192
      %v225 = vpack.c.bf16 %v193, %v193
      %v226 = vpack.c.bf16 %v194, %v194
      %v227 = vpack.c.bf16 %v195, %v195
      %v228 = vpack.c.bf16 %v196, %v196
      %v229 = vpack.c.bf16 %v197, %v197
      %v230 = vpack.c.bf16 %v198, %v198
      %v231 = vpack.c.bf16 %v199, %v199
      %v232 = vpack.c.bf16 %v200, %v200
      %v233 = vpack.c.bf16 %v201, %v201
      %v234 = vpack.c.bf16 %v202, %v202
      %v235 = vpack.c.bf16 %v203, %v203
      %v236 = vpack.c.bf16 %v204, %v204
      %v237 = vpack.c.bf16 %v205, %v205
      %v238 = vpack.c.bf16 %v206, %v206
      %v239 = vpack.c.bf16 %v207, %v207
      %v240 = vpack.c.bf16 %v208, %v208
      %v241 = vpack.c.bf16 %v209, %v209
      %v242 = vpack.c.bf16 %v210, %v210
      %v243 = vpack.c.bf16 %v211, %v211
      %v244 = vpack.c.bf16 %v212, %v212
      %v245 = vpack.c.bf16 %v213, %v213
      %v246 = vpack.c.bf16 %v214, %v214
      %vm247 = vcmask 27648
      %248 = vst.msk [vmem:[#allocation2] sm:$0xf] %vm247, %v215
      %249 = vst.msk [vmem:[#allocation2 + $0x4] sm:$0xf] %vm247, %v216
      %250 = vst.msk [vmem:[#allocation2 + $0x8] sm:$0xf] %vm247, %v217
      %251 = vst.msk [vmem:[#allocation2 + $0xc] sm:$0xf] %vm247, %v218
      %252 = vst.msk [vmem:[#allocation2 + $0x10] sm:$0xf] %vm247, %v219
      %253 = vst.msk [vmem:[#allocation2 + $0x14] sm:$0xf] %vm247, %v220
      %254 = vst.msk [vmem:[#allocation2 + $0x18] sm:$0xf] %vm247, %v221
      %255 = vst.msk [vmem:[#allocation2 + $0x1c] sm:$0xf] %vm247, %v222
      %256 = vst.msk [vmem:[#allocation2 + $0x20] sm:$0xf] %vm247, %v223
      %257 = vst.msk [vmem:[#allocation2 + $0x24] sm:$0xf] %vm247, %v224
      %258 = vst.msk [vmem:[#allocation2 + $0x28] sm:$0xf] %vm247, %v225
      %259 = vst.msk [vmem:[#allocation2 + $0x2c] sm:$0xf] %vm247, %v226
      %260 = vst.msk [vmem:[#allocation2 + $0x30] sm:$0xf] %vm247, %v227
      %261 = vst.msk [vmem:[#allocation2 + $0x34] sm:$0xf] %vm247, %v228
      %262 = vst.msk [vmem:[#allocation2 + $0x38] sm:$0xf] %vm247, %v229
      %263 = vst.msk [vmem:[#allocation2 + $0x3c] sm:$0xf] %vm247, %v230
      %264 = vst.msk [vmem:[#allocation2 + $0x40] sm:$0xf] %vm247, %v231
      %265 = vst.msk [vmem:[#allocation2 + $0x44] sm:$0xf] %vm247, %v232
      %266 = vst.msk [vmem:[#allocation2 + $0x48] sm:$0xf] %vm247, %v233
      %267 = vst.msk [vmem:[#allocation2 + $0x4c] sm:$0xf] %vm247, %v234
      %268 = vst.msk [vmem:[#allocation2 + $0x50] sm:$0xf] %vm247, %v235
      %269 = vst.msk [vmem:[#allocation2 + $0x54] sm:$0xf] %vm247, %v236
      %270 = vst.msk [vmem:[#allocation2 + $0x58] sm:$0xf] %vm247, %v237
      %271 = vst.msk [vmem:[#allocation2 + $0x5c] sm:$0xf] %vm247, %v238
      %272 = vst.msk [vmem:[#allocation2 + $0x60] sm:$0xf] %vm247, %v239
      %273 = vst.msk [vmem:[#allocation2 + $0x64] sm:$0xf] %vm247, %v240
      %274 = vst.msk [vmem:[#allocation2 + $0x68] sm:$0xf] %vm247, %v241
      %275 = vst.msk [vmem:[#allocation2 + $0x6c] sm:$0xf] %vm247, %v242
      %276 = vst.msk [vmem:[#allocation2 + $0x70] sm:$0xf] %vm247, %v243
      %277 = vst.msk [vmem:[#allocation2 + $0x74] sm:$0xf] %vm247, %v244
      %278 = vst.msk [vmem:[#allocation2 + $0x78] sm:$0xf] %vm247, %v245
      %279 = vst.msk [vmem:[#allocation2 + $0x7c] sm:$0xf] %vm247, %v246
      %v280 = vld [vmem:[%s172 + $0x2] sm:$0xff]
      %v281 = vld [vmem:[%s172 + $0xa] sm:$0xff]
      %v282 = vld [vmem:[%s172 + $0x1a] sm:$0xff]
      %v283 = vld [vmem:[%s172 + $0x22] sm:$0xff]
      %v284 = vld [vmem:[%s172 + $0x32] sm:$0xff]
      %v285 = vld [vmem:[%s172 + $0x3a] sm:$0xff]
      %v286 = vld [vmem:[%s172 + $0x4a] sm:$0xff]
      %v287 = vld [vmem:[%s172 + $0x52] sm:$0xff]
      %v288 = vld [vmem:[%s172 + $0x62] sm:$0xff]
      %v289 = vld [vmem:[%s172 + $0x6a] sm:$0xff]
      %v290 = vld [vmem:[%s172 + $0x7a] sm:$0xff]
      %v291 = vld [vmem:[%s172 + $0x82] sm:$0xff]
      %v292 = vld [vmem:[%s172 + $0x92] sm:$0xff]
      %v293 = vld [vmem:[%s172 + $0x9a] sm:$0xff]
      %v294 = vld [vmem:[%s172 + $0xaa] sm:$0xff]
      %v295 = vld [vmem:[%s172 + $0xb2] sm:$0xff]
      %v296 = vld [vmem:[%s172 + $0xc2] sm:$0xff]
      %v297 = vld [vmem:[%s172 + $0xca] sm:$0xff]
      %v298 = vld [vmem:[%s172 + $0xda] sm:$0xff]
      %v299 = vld [vmem:[%s172 + $0xe2] sm:$0xff]
      %v300 = vld [vmem:[%s172 + $0xf2] sm:$0xff]
      %v301 = vld [vmem:[%s172 + $0xfa] sm:$0xff]
      %v302 = vld [vmem:[%s172 + $0x10a] sm:$0xff]
      %v303 = vld [vmem:[%s172 + $0x112] sm:$0xff]
      %v304 = vld [vmem:[%s172 + $0x122] sm:$0xff]
      %v305 = vld [vmem:[%s172 + $0x12a] sm:$0xff]
      %v306 = vld [vmem:[%s172 + $0x13a] sm:$0xff]
      %v307 = vld [vmem:[%s172 + $0x142] sm:$0xff]
      %v308 = vld [vmem:[%s172 + $0x152] sm:$0xff]
      %v309 = vld [vmem:[%s172 + $0x15a] sm:$0xff]
      %v310 = vld [vmem:[%s172 + $0x16a] sm:$0xff]
      %v311 = vld [vmem:[%s172 + $0x172] sm:$0xff]
      %v312 = vpack.c.bf16 %v280, %v280
      %v313 = vpack.c.bf16 %v281, %v281
      %v314 = vpack.c.bf16 %v282, %v282
      %v315 = vpack.c.bf16 %v283, %v283
      %v316 = vpack.c.bf16 %v284, %v284
      %v317 = vpack.c.bf16 %v285, %v285
      %v318 = vpack.c.bf16 %v286, %v286
      %v319 = vpack.c.bf16 %v287, %v287
      %v320 = vpack.c.bf16 %v288, %v288
      %v321 = vpack.c.bf16 %v289, %v289
      %v322 = vpack.c.bf16 %v290, %v290
      %v323 = vpack.c.bf16 %v291, %v291
      %v324 = vpack.c.bf16 %v292, %v292
      %v325 = vpack.c.bf16 %v293, %v293
      %v326 = vpack.c.bf16 %v294, %v294
      %v327 = vpack.c.bf16 %v295, %v295
      %v328 = vpack.c.bf16 %v296, %v296
      %v329 = vpack.c.bf16 %v297, %v297
      %v330 = vpack.c.bf16 %v298, %v298
      %v331 = vpack.c.bf16 %v299, %v299
      %v332 = vpack.c.bf16 %v300, %v300
      %v333 = vpack.c.bf16 %v301, %v301
      %v334 = vpack.c.bf16 %v302, %v302
      %v335 = vpack.c.bf16 %v303, %v303
      %v336 = vpack.c.bf16 %v304, %v304
      %v337 = vpack.c.bf16 %v305, %v305
      %v338 = vpack.c.bf16 %v306, %v306
      %v339 = vpack.c.bf16 %v307, %v307
      %v340 = vpack.c.bf16 %v308, %v308
      %v341 = vpack.c.bf16 %v309, %v309
      %v342 = vpack.c.bf16 %v310, %v310
      %v343 = vpack.c.bf16 %v311, %v311
      %376 = vrot.lane.b32.xlu0 %v312, 4
      %v377 = vpop.permute.xlu0 %376
      %378 = vrot.lane.b32.xlu0 %v313, 4
      %v379 = vpop.permute.xlu0 %378
      %380 = vrot.lane.b32.xlu0 %v314, 4
      %v381 = vpop.permute.xlu0 %380
      %382 = vrot.lane.b32.xlu0 %v315, 4
      %v383 = vpop.permute.xlu0 %382
      %384 = vrot.lane.b32.xlu0 %v316, 4
      %v385 = vpop.permute.xlu0 %384
      %386 = vrot.lane.b32.xlu0 %v317, 4
      %v387 = vpop.permute.xlu0 %386
      %388 = vrot.lane.b32.xlu0 %v318, 4
      %v389 = vpop.permute.xlu0 %388
      %390 = vrot.lane.b32.xlu0 %v319, 4
      %v391 = vpop.permute.xlu0 %390
      %392 = vrot.lane.b32.xlu0 %v320, 4
      %v393 = vpop.permute.xlu0 %392
      %394 = vrot.lane.b32.xlu0 %v321, 4
      %v395 = vpop.permute.xlu0 %394
      %396 = vrot.lane.b32.xlu0 %v322, 4
      %v397 = vpop.permute.xlu0 %396
      %398 = vrot.lane.b32.xlu0 %v323, 4
      %v399 = vpop.permute.xlu0 %398
      %400 = vrot.lane.b32.xlu0 %v324, 4
      %v401 = vpop.permute.xlu0 %400
      %402 = vrot.lane.b32.xlu0 %v325, 4
      %v403 = vpop.permute.xlu0 %402
      %404 = vrot.lane.b32.xlu0 %v326, 4
      %v405 = vpop.permute.xlu0 %404
      %406 = vrot.lane.b32.xlu0 %v327, 4
      %v407 = vpop.permute.xlu0 %406
      %408 = vrot.lane.b32.xlu0 %v328, 4
      %v409 = vpop.permute.xlu0 %408
      %410 = vrot.lane.b32.xlu0 %v329, 4
      %v411 = vpop.permute.xlu0 %410
      %412 = vrot.lane.b32.xlu0 %v330, 4
      %v413 = vpop.permute.xlu0 %412
      %414 = vrot.lane.b32.xlu0 %v331, 4
      %v415 = vpop.permute.xlu0 %414
      %416 = vrot.lane.b32.xlu0 %v332, 4
      %v417 = vpop.permute.xlu0 %416
      %418 = vrot.lane.b32.xlu0 %v333, 4
      %v419 = vpop.permute.xlu0 %418
      %420 = vrot.lane.b32.xlu0 %v334, 4
      %v421 = vpop.permute.xlu0 %420
      %422 = vrot.lane.b32.xlu0 %v335, 4
      %v423 = vpop.permute.xlu0 %422
      %424 = vrot.lane.b32.xlu0 %v336, 4
      %v425 = vpop.permute.xlu0 %424
      %426 = vrot.lane.b32.xlu0 %v337, 4
      %v427 = vpop.permute.xlu0 %426
      %428 = vrot.lane.b32.xlu0 %v338, 4
      %v429 = vpop.permute.xlu0 %428
      %430 = vrot.lane.b32.xlu0 %v339, 4
      %v431 = vpop.permute.xlu0 %430
      %432 = vrot.lane.b32.xlu0 %v340, 4
      %v433 = vpop.permute.xlu0 %432
      %434 = vrot.lane.b32.xlu0 %v341, 4
      %v435 = vpop.permute.xlu0 %434
      %436 = vrot.lane.b32.xlu0 %v342, 4
      %v437 = vpop.permute.xlu0 %436
      %438 = vrot.lane.b32.xlu0 %v343, 4
      %v439 = vpop.permute.xlu0 %438
      %vm472 = vcmask 60448
      %473 = vst.msk [vmem:[#allocation2] sm:$0xf] %vm472, %v377
      %474 = vst.msk [vmem:[#allocation2 + $0x4] sm:$0xf] %vm472, %v379
      %475 = vst.msk [vmem:[#allocation2 + $0x8] sm:$0xf] %vm472, %v381
      %476 = vst.msk [vmem:[#allocation2 + $0xc] sm:$0xf] %vm472, %v383
      %477 = vst.msk [vmem:[#allocation2 + $0x10] sm:$0xf] %vm472, %v385
      %478 = vst.msk [vmem:[#allocation2 + $0x14] sm:$0xf] %vm472, %v387
      %479 = vst.msk [vmem:[#allocation2 + $0x18] sm:$0xf] %vm472, %v389
      %480 = vst.msk [vmem:[#allocation2 + $0x1c] sm:$0xf] %vm472, %v391
      %481 = vst.msk [vmem:[#allocation2 + $0x20] sm:$0xf] %vm472, %v393
      %482 = vst.msk [vmem:[#allocation2 + $0x24] sm:$0xf] %vm472, %v395
      %483 = vst.msk [vmem:[#allocation2 + $0x28] sm:$0xf] %vm472, %v397
      %484 = vst.msk [vmem:[#allocation2 + $0x2c] sm:$0xf] %vm472, %v399
      %485 = vst.msk [vmem:[#allocation2 + $0x30] sm:$0xf] %vm472, %v401
      %486 = vst.msk [vmem:[#allocation2 + $0x34] sm:$0xf] %vm472, %v403
      %487 = vst.msk [vmem:[#allocation2 + $0x38] sm:$0xf] %vm472, %v405
      %488 = vst.msk [vmem:[#allocation2 + $0x3c] sm:$0xf] %vm472, %v407
      %489 = vst.msk [vmem:[#allocation2 + $0x40] sm:$0xf] %vm472, %v409
      %490 = vst.msk [vmem:[#allocation2 + $0x44] sm:$0xf] %vm472, %v411
      %491 = vst.msk [vmem:[#allocation2 + $0x48] sm:$0xf] %vm472, %v413
      %492 = vst.msk [vmem:[#allocation2 + $0x4c] sm:$0xf] %vm472, %v415
      %493 = vst.msk [vmem:[#allocation2 + $0x50] sm:$0xf] %vm472, %v417
      %494 = vst.msk [vmem:[#allocation2 + $0x54] sm:$0xf] %vm472, %v419
      %495 = vst.msk [vmem:[#allocation2 + $0x58] sm:$0xf] %vm472, %v421
      %496 = vst.msk [vmem:[#allocation2 + $0x5c] sm:$0xf] %vm472, %v423
      %497 = vst.msk [vmem:[#allocation2 + $0x60] sm:$0xf] %vm472, %v425
      %498 = vst.msk [vmem:[#allocation2 + $0x64] sm:$0xf] %vm472, %v427
      %499 = vst.msk [vmem:[#allocation2 + $0x68] sm:$0xf] %vm472, %v429
      %500 = vst.msk [vmem:[#allocation2 + $0x6c] sm:$0xf] %vm472, %v431
      %501 = vst.msk [vmem:[#allocation2 + $0x70] sm:$0xf] %vm472, %v433
      %502 = vst.msk [vmem:[#allocation2 + $0x74] sm:$0xf] %vm472, %v435
      %503 = vst.msk [vmem:[#allocation2 + $0x78] sm:$0xf] %vm472, %v437
      %504 = vst.msk [vmem:[#allocation2 + $0x7c] sm:$0xf] %vm472, %v439
      %v505 = vld [vmem:[%s172 + $0x4] sm:$0xff]
      %v506 = vld [vmem:[%s172 + $0xc] sm:$0xff]
      %v507 = vld [vmem:[%s172 + $0x1c] sm:$0xff]
      %v508 = vld [vmem:[%s172 + $0x24] sm:$0xff]
      %v509 = vld [vmem:[%s172 + $0x34] sm:$0xff]
      %v510 = vld [vmem:[%s172 + $0x3c] sm:$0xff]
      %v511 = vld [vmem:[%s172 + $0x4c] sm:$0xff]
      %v512 = vld [vmem:[%s172 + $0x54] sm:$0xff]
      %v513 = vld [vmem:[%s172 + $0x64] sm:$0xff]
      %v514 = vld [vmem:[%s172 + $0x6c] sm:$0xff]
      %v515 = vld [vmem:[%s172 + $0x7c] sm:$0xff]
      %v516 = vld [vmem:[%s172 + $0x84] sm:$0xff]
      %v517 = vld [vmem:[%s172 + $0x94] sm:$0xff]
      %v518 = vld [vmem:[%s172 + $0x9c] sm:$0xff]
      %v519 = vld [vmem:[%s172 + $0xac] sm:$0xff]
      %v520 = vld [vmem:[%s172 + $0xb4] sm:$0xff]
      %v521 = vld [vmem:[%s172 + $0xc4] sm:$0xff]
      %v522 = vld [vmem:[%s172 + $0xcc] sm:$0xff]
      %v523 = vld [vmem:[%s172 + $0xdc] sm:$0xff]
      %v524 = vld [vmem:[%s172 + $0xe4] sm:$0xff]
      %v525 = vld [vmem:[%s172 + $0xf4] sm:$0xff]
      %v526 = vld [vmem:[%s172 + $0xfc] sm:$0xff]
      %v527 = vld [vmem:[%s172 + $0x10c] sm:$0xff]
      %v528 = vld [vmem:[%s172 + $0x114] sm:$0xff]
      %v529 = vld [vmem:[%s172 + $0x124] sm:$0xff]
      %v530 = vld [vmem:[%s172 + $0x12c] sm:$0xff]
      %v531 = vld [vmem:[%s172 + $0x13c] sm:$0xff]
      %v532 = vld [vmem:[%s172 + $0x144] sm:$0xff]
      %v533 = vld [vmem:[%s172 + $0x154] sm:$0xff]
      %v534 = vld [vmem:[%s172 + $0x15c] sm:$0xff]
      %v535 = vld [vmem:[%s172 + $0x16c] sm:$0xff]
      %v536 = vld [vmem:[%s172 + $0x174] sm:$0xff]
      %v537 = vpack.c.bf16 %v505, %v505
      %v538 = vpack.c.bf16 %v506, %v506
      %v539 = vpack.c.bf16 %v507, %v507
      %v540 = vpack.c.bf16 %v508, %v508
      %v541 = vpack.c.bf16 %v509, %v509
      %v542 = vpack.c.bf16 %v510, %v510
      %v543 = vpack.c.bf16 %v511, %v511
      %v544 = vpack.c.bf16 %v512, %v512
      %v545 = vpack.c.bf16 %v513, %v513
      %v546 = vpack.c.bf16 %v514, %v514
      %v547 = vpack.c.bf16 %v515, %v515
      %v548 = vpack.c.bf16 %v516, %v516
      %v549 = vpack.c.bf16 %v517, %v517
      %v550 = vpack.c.bf16 %v518, %v518
      %v551 = vpack.c.bf16 %v519, %v519
      %v552 = vpack.c.bf16 %v520, %v520
      %v553 = vpack.c.bf16 %v521, %v521
      %v554 = vpack.c.bf16 %v522, %v522
      %v555 = vpack.c.bf16 %v523, %v523
      %v556 = vpack.c.bf16 %v524, %v524
      %v557 = vpack.c.bf16 %v525, %v525
      %v558 = vpack.c.bf16 %v526, %v526
      %v559 = vpack.c.bf16 %v527, %v527
      %v560 = vpack.c.bf16 %v528, %v528
      %v561 = vpack.c.bf16 %v529, %v529
      %v562 = vpack.c.bf16 %v530, %v530
      %v563 = vpack.c.bf16 %v531, %v531
      %v564 = vpack.c.bf16 %v532, %v532
      %v565 = vpack.c.bf16 %v533, %v533
      %v566 = vpack.c.bf16 %v534, %v534
      %v567 = vpack.c.bf16 %v535, %v535
      %v568 = vpack.c.bf16 %v536, %v536
      %601 = vrot.lane.b32.xlu0 %v537, 8
      %v602 = vpop.permute.xlu0 %601
      %603 = vrot.lane.b32.xlu0 %v538, 8
      %v604 = vpop.permute.xlu0 %603
      %605 = vrot.lane.b32.xlu0 %v539, 8
      %v606 = vpop.permute.xlu0 %605
      %607 = vrot.lane.b32.xlu0 %v540, 8
      %v608 = vpop.permute.xlu0 %607
      %609 = vrot.lane.b32.xlu0 %v541, 8
      %v610 = vpop.permute.xlu0 %609
      %611 = vrot.lane.b32.xlu0 %v542, 8
      %v612 = vpop.permute.xlu0 %611
      %613 = vrot.lane.b32.xlu0 %v543, 8
      %v614 = vpop.permute.xlu0 %613
      %615 = vrot.lane.b32.xlu0 %v544, 8
      %v616 = vpop.permute.xlu0 %615
      %617 = vrot.lane.b32.xlu0 %v545, 8
      %v618 = vpop.permute.xlu0 %617
      %619 = vrot.lane.b32.xlu0 %v546, 8
      %v620 = vpop.permute.xlu0 %619
      %621 = vrot.lane.b32.xlu0 %v547, 8
      %v622 = vpop.permute.xlu0 %621
      %623 = vrot.lane.b32.xlu0 %v548, 8
      %v624 = vpop.permute.xlu0 %623
      %625 = vrot.lane.b32.xlu0 %v549, 8
      %v626 = vpop.permute.xlu0 %625
      %627 = vrot.lane.b32.xlu0 %v550, 8
      %v628 = vpop.permute.xlu0 %627
      %629 = vrot.lane.b32.xlu0 %v551, 8
      %v630 = vpop.permute.xlu0 %629
      %631 = vrot.lane.b32.xlu0 %v552, 8
      %v632 = vpop.permute.xlu0 %631
      %633 = vrot.lane.b32.xlu0 %v553, 8
      %v634 = vpop.permute.xlu0 %633
      %635 = vrot.lane.b32.xlu0 %v554, 8
      %v636 = vpop.permute.xlu0 %635
      %637 = vrot.lane.b32.xlu0 %v555, 8
      %v638 = vpop.permute.xlu0 %637
      %639 = vrot.lane.b32.xlu0 %v556, 8
      %v640 = vpop.permute.xlu0 %639
      %641 = vrot.lane.b32.xlu0 %v557, 8
      %v642 = vpop.permute.xlu0 %641
      %643 = vrot.lane.b32.xlu0 %v558, 8
      %v644 = vpop.permute.xlu0 %643
      %645 = vrot.lane.b32.xlu0 %v559, 8
      %v646 = vpop.permute.xlu0 %645
      %647 = vrot.lane.b32.xlu0 %v560, 8
      %v648 = vpop.permute.xlu0 %647
      %649 = vrot.lane.b32.xlu0 %v561, 8
      %v650 = vpop.permute.xlu0 %649
      %651 = vrot.lane.b32.xlu0 %v562, 8
      %v652 = vpop.permute.xlu0 %651
      %653 = vrot.lane.b32.xlu0 %v563, 8
      %v654 = vpop.permute.xlu0 %653
      %655 = vrot.lane.b32.xlu0 %v564, 8
      %v656 = vpop.permute.xlu0 %655
      %657 = vrot.lane.b32.xlu0 %v565, 8
      %v658 = vpop.permute.xlu0 %657
      %659 = vrot.lane.b32.xlu0 %v566, 8
      %v660 = vpop.permute.xlu0 %659
      %661 = vrot.lane.b32.xlu0 %v567, 8
      %v662 = vpop.permute.xlu0 %661
      %663 = vrot.lane.b32.xlu0 %v568, 8
      %v664 = vpop.permute.xlu0 %663
      %vm697 = vcmask 93248
      %698 = vst.msk [vmem:[#allocation2] sm:$0xf] %vm697, %v602
      %699 = vst.msk [vmem:[#allocation2 + $0x4] sm:$0xf] %vm697, %v604
      %700 = vst.msk [vmem:[#allocation2 + $0x8] sm:$0xf] %vm697, %v606
      %701 = vst.msk [vmem:[#allocation2 + $0xc] sm:$0xf] %vm697, %v608
      %702 = vst.msk [vmem:[#allocation2 + $0x10] sm:$0xf] %vm697, %v610
      %703 = vst.msk [vmem:[#allocation2 + $0x14] sm:$0xf] %vm697, %v612
      %704 = vst.msk [vmem:[#allocation2 + $0x18] sm:$0xf] %vm697, %v614
      %705 = vst.msk [vmem:[#allocation2 + $0x1c] sm:$0xf] %vm697, %v616
      %706 = vst.msk [vmem:[#allocation2 + $0x20] sm:$0xf] %vm697, %v618
      %707 = vst.msk [vmem:[#allocation2 + $0x24] sm:$0xf] %vm697, %v620
      %708 = vst.msk [vmem:[#allocation2 + $0x28] sm:$0xf] %vm697, %v622
      %709 = vst.msk [vmem:[#allocation2 + $0x2c] sm:$0xf] %vm697, %v624
      %710 = vst.msk [vmem:[#allocation2 + $0x30] sm:$0xf] %vm697, %v626
      %711 = vst.msk [vmem:[#allocation2 + $0x34] sm:$0xf] %vm697, %v628
      %712 = vst.msk [vmem:[#allocation2 + $0x38] sm:$0xf] %vm697, %v630
      %713 = vst.msk [vmem:[#allocation2 + $0x3c] sm:$0xf] %vm697, %v632
      %714 = vst.msk [vmem:[#allocation2 + $0x40] sm:$0xf] %vm697, %v634
      %715 = vst.msk [vmem:[#allocation2 + $0x44] sm:$0xf] %vm697, %v636
      %716 = vst.msk [vmem:[#allocation2 + $0x48] sm:$0xf] %vm697, %v638
      %717 = vst.msk [vmem:[#allocation2 + $0x4c] sm:$0xf] %vm697, %v640
      %718 = vst.msk [vmem:[#allocation2 + $0x50] sm:$0xf] %vm697, %v642
      %719 = vst.msk [vmem:[#allocation2 + $0x54] sm:$0xf] %vm697, %v644
      %720 = vst.msk [vmem:[#allocation2 + $0x58] sm:$0xf] %vm697, %v646
      %721 = vst.msk [vmem:[#allocation2 + $0x5c] sm:$0xf] %vm697, %v648
      %722 = vst.msk [vmem:[#allocation2 + $0x60] sm:$0xf] %vm697, %v650
      %723 = vst.msk [vmem:[#allocation2 + $0x64] sm:$0xf] %vm697, %v652
      %724 = vst.msk [vmem:[#allocation2 + $0x68] sm:$0xf] %vm697, %v654
      %725 = vst.msk [vmem:[#allocation2 + $0x6c] sm:$0xf] %vm697, %v656
      %726 = vst.msk [vmem:[#allocation2 + $0x70] sm:$0xf] %vm697, %v658
      %727 = vst.msk [vmem:[#allocation2 + $0x74] sm:$0xf] %vm697, %v660
      %728 = vst.msk [vmem:[#allocation2 + $0x78] sm:$0xf] %vm697, %v662
      %729 = vst.msk [vmem:[#allocation2 + $0x7c] sm:$0xf] %vm697, %v664
      %s730 = scalar_lea.vmem %s172, 48
      %v731 = vld [vmem:[%s730] sm:$0xff]
      %v732 = vld [vmem:[%s730 + $0x8] sm:$0xff]
      %v733 = vld [vmem:[%s730 + $0x18] sm:$0xff]
      %v734 = vld [vmem:[%s730 + $0x20] sm:$0xff]
      %v735 = vld [vmem:[%s730 + $0x30] sm:$0xff]
      %v736 = vld [vmem:[%s730 + $0x38] sm:$0xff]
      %v737 = vld [vmem:[%s730 + $0x48] sm:$0xff]
      %v738 = vld [vmem:[%s730 + $0x50] sm:$0xff]
      %v739 = vld [vmem:[%s730 + $0x60] sm:$0xff]
      %v740 = vld [vmem:[%s730 + $0x68] sm:$0xff]
      %v741 = vld [vmem:[%s730 + $0x78] sm:$0xff]
      %v742 = vld [vmem:[%s730 + $0x80] sm:$0xff]
      %v743 = vld [vmem:[%s730 + $0x90] sm:$0xff]
      %v744 = vld [vmem:[%s730 + $0x98] sm:$0xff]
      %v745 = vld [vmem:[%s730 + $0xa8] sm:$0xff]
      %v746 = vld [vmem:[%s730 + $0xb0] sm:$0xff]
      %v747 = vld [vmem:[%s730 + $0xc0] sm:$0xff]
      %v748 = vld [vmem:[%s730 + $0xc8] sm:$0xff]
      %v749 = vld [vmem:[%s730 + $0xd8] sm:$0xff]
      %v750 = vld [vmem:[%s730 + $0xe0] sm:$0xff]
      %v751 = vld [vmem:[%s730 + $0xf0] sm:$0xff]
      %v752 = vld [vmem:[%s730 + $0xf8] sm:$0xff]
      %v753 = vld [vmem:[%s730 + $0x108] sm:$0xff]
      %v754 = vld [vmem:[%s730 + $0x110] sm:$0xff]
      %v755 = vld [vmem:[%s730 + $0x120] sm:$0xff]
      %v756 = vld [vmem:[%s730 + $0x128] sm:$0xff]
      %v757 = vld [vmem:[%s730 + $0x138] sm:$0xff]
      %v758 = vld [vmem:[%s730 + $0x140] sm:$0xff]
      %v759 = vld [vmem:[%s730 + $0x150] sm:$0xff]
      %v760 = vld [vmem:[%s730 + $0x158] sm:$0xff]
      %v761 = vld [vmem:[%s730 + $0x168] sm:$0xff]
      %v762 = vld [vmem:[%s730 + $0x170] sm:$0xff]
      %v763 = vpack.c.bf16 %v731, %v731
      %v764 = vpack.c.bf16 %v732, %v732
      %v765 = vpack.c.bf16 %v733, %v733
      %v766 = vpack.c.bf16 %v734, %v734
      %v767 = vpack.c.bf16 %v735, %v735
      %v768 = vpack.c.bf16 %v736, %v736
      %v769 = vpack.c.bf16 %v737, %v737
      %v770 = vpack.c.bf16 %v738, %v738
      %v771 = vpack.c.bf16 %v739, %v739
      %v772 = vpack.c.bf16 %v740, %v740
      %v773 = vpack.c.bf16 %v741, %v741
      %v774 = vpack.c.bf16 %v742, %v742
      %v775 = vpack.c.bf16 %v743, %v743
      %v776 = vpack.c.bf16 %v744, %v744
      %v777 = vpack.c.bf16 %v745, %v745
      %v778 = vpack.c.bf16 %v746, %v746
      %v779 = vpack.c.bf16 %v747, %v747
      %v780 = vpack.c.bf16 %v748, %v748
      %v781 = vpack.c.bf16 %v749, %v749
      %v782 = vpack.c.bf16 %v750, %v750
      %v783 = vpack.c.bf16 %v751, %v751
      %v784 = vpack.c.bf16 %v752, %v752
      %v785 = vpack.c.bf16 %v753, %v753
      %v786 = vpack.c.bf16 %v754, %v754
      %v787 = vpack.c.bf16 %v755, %v755
      %v788 = vpack.c.bf16 %v756, %v756
      %v789 = vpack.c.bf16 %v757, %v757
      %v790 = vpack.c.bf16 %v758, %v758
      %v791 = vpack.c.bf16 %v759, %v759
      %v792 = vpack.c.bf16 %v760, %v760
      %v793 = vpack.c.bf16 %v761, %v761
      %v794 = vpack.c.bf16 %v762, %v762
      %827 = vrot.lane.b32.xlu0 %v763, 12
      %v828 = vpop.permute.xlu0 %827
      %829 = vrot.lane.b32.xlu0 %v764, 12
      %v830 = vpop.permute.xlu0 %829
      %831 = vrot.lane.b32.xlu0 %v765, 12
      %v832 = vpop.permute.xlu0 %831
      %833 = vrot.lane.b32.xlu0 %v766, 12
      %v834 = vpop.permute.xlu0 %833
      %835 = vrot.lane.b32.xlu0 %v767, 12
      %v836 = vpop.permute.xlu0 %835
      %837 = vrot.lane.b32.xlu0 %v768, 12
      %v838 = vpop.permute.xlu0 %837
      %839 = vrot.lane.b32.xlu0 %v769, 12
      %v840 = vpop.permute.xlu0 %839
      %841 = vrot.lane.b32.xlu0 %v770, 12
      %v842 = vpop.permute.xlu0 %841
      %843 = vrot.lane.b32.xlu0 %v771, 12
      %v844 = vpop.permute.xlu0 %843
      %845 = vrot.lane.b32.xlu0 %v772, 12
      %v846 = vpop.permute.xlu0 %845
      %847 = vrot.lane.b32.xlu0 %v773, 12
      %v848 = vpop.permute.xlu0 %847
      %849 = vrot.lane.b32.xlu0 %v774, 12
      %v850 = vpop.permute.xlu0 %849
      %851 = vrot.lane.b32.xlu0 %v775, 12
      %v852 = vpop.permute.xlu0 %851
      %853 = vrot.lane.b32.xlu0 %v776, 12
      %v854 = vpop.permute.xlu0 %853
      %855 = vrot.lane.b32.xlu0 %v777, 12
      %v856 = vpop.permute.xlu0 %855
      %857 = vrot.lane.b32.xlu0 %v778, 12
      %v858 = vpop.permute.xlu0 %857
      %859 = vrot.lane.b32.xlu0 %v779, 12
      %v860 = vpop.permute.xlu0 %859
      %861 = vrot.lane.b32.xlu0 %v780, 12
      %v862 = vpop.permute.xlu0 %861
      %863 = vrot.lane.b32.xlu0 %v781, 12
      %v864 = vpop.permute.xlu0 %863
      %865 = vrot.lane.b32.xlu0 %v782, 12
      %v866 = vpop.permute.xlu0 %865
      %867 = vrot.lane.b32.xlu0 %v783, 12
      %v868 = vpop.permute.xlu0 %867
      %869 = vrot.lane.b32.xlu0 %v784, 12
      %v870 = vpop.permute.xlu0 %869
      %871 = vrot.lane.b32.xlu0 %v785, 12
      %v872 = vpop.permute.xlu0 %871
      %873 = vrot.lane.b32.xlu0 %v786, 12
      %v874 = vpop.permute.xlu0 %873
      %875 = vrot.lane.b32.xlu0 %v787, 12
      %v876 = vpop.permute.xlu0 %875
      %877 = vrot.lane.b32.xlu0 %v788, 12
      %v878 = vpop.permute.xlu0 %877
      %879 = vrot.lane.b32.xlu0 %v789, 12
      %v880 = vpop.permute.xlu0 %879
      %881 = vrot.lane.b32.xlu0 %v790, 12
      %v882 = vpop.permute.xlu0 %881
      %883 = vrot.lane.b32.xlu0 %v791, 12
      %v884 = vpop.permute.xlu0 %883
      %885 = vrot.lane.b32.xlu0 %v792, 12
      %v886 = vpop.permute.xlu0 %885
      %887 = vrot.lane.b32.xlu0 %v793, 12
      %v888 = vpop.permute.xlu0 %887
      %889 = vrot.lane.b32.xlu0 %v794, 12
      %v890 = vpop.permute.xlu0 %889
      %vm923 = vcmask 126048
      %924 = vst.msk [vmem:[#allocation2] sm:$0xf] %vm923, %v828
      %925 = vst.msk [vmem:[#allocation2 + $0x4] sm:$0xf] %vm923, %v830
      %926 = vst.msk [vmem:[#allocation2 + $0x8] sm:$0xf] %vm923, %v832
      %927 = vst.msk [vmem:[#allocation2 + $0xc] sm:$0xf] %vm923, %v834
      %928 = vst.msk [vmem:[#allocation2 + $0x10] sm:$0xf] %vm923, %v836
      %929 = vst.msk [vmem:[#allocation2 + $0x14] sm:$0xf] %vm923, %v838
      %930 = vst.msk [vmem:[#allocation2 + $0x18] sm:$0xf] %vm923, %v840
      %931 = vst.msk [vmem:[#allocation2 + $0x1c] sm:$0xf] %vm923, %v842
      %932 = vst.msk [vmem:[#allocation2 + $0x20] sm:$0xf] %vm923, %v844
      %933 = vst.msk [vmem:[#allocation2 + $0x24] sm:$0xf] %vm923, %v846
      %934 = vst.msk [vmem:[#allocation2 + $0x28] sm:$0xf] %vm923, %v848
      %935 = vst.msk [vmem:[#allocation2 + $0x2c] sm:$0xf] %vm923, %v850
      %936 = vst.msk [vmem:[#allocation2 + $0x30] sm:$0xf] %vm923, %v852
      %937 = vst.msk [vmem:[#allocation2 + $0x34] sm:$0xf] %vm923, %v854
      %938 = vst.msk [vmem:[#allocation2 + $0x38] sm:$0xf] %vm923, %v856
      %939 = vst.msk [vmem:[#allocation2 + $0x3c] sm:$0xf] %vm923, %v858
      %940 = vst.msk [vmem:[#allocation2 + $0x40] sm:$0xf] %vm923, %v860
      %941 = vst.msk [vmem:[#allocation2 + $0x44] sm:$0xf] %vm923, %v862
      %942 = vst.msk [vmem:[#allocation2 + $0x48] sm:$0xf] %vm923, %v864
      %943 = vst.msk [vmem:[#allocation2 + $0x4c] sm:$0xf] %vm923, %v866
      %944 = vst.msk [vmem:[#allocation2 + $0x50] sm:$0xf] %vm923, %v868
      %945 = vst.msk [vmem:[#allocation2 + $0x54] sm:$0xf] %vm923, %v870
      %946 = vst.msk [vmem:[#allocation2 + $0x58] sm:$0xf] %vm923, %v872
      %947 = vst.msk [vmem:[#allocation2 + $0x5c] sm:$0xf] %vm923, %v874
      %948 = vst.msk [vmem:[#allocation2 + $0x60] sm:$0xf] %vm923, %v876
      %949 = vst.msk [vmem:[#allocation2 + $0x64] sm:$0xf] %vm923, %v878
      %950 = vst.msk [vmem:[#allocation2 + $0x68] sm:$0xf] %vm923, %v880
      %951 = vst.msk [vmem:[#allocation2 + $0x6c] sm:$0xf] %vm923, %v882
      %952 = vst.msk [vmem:[#allocation2 + $0x70] sm:$0xf] %vm923, %v884
      %953 = vst.msk [vmem:[#allocation2 + $0x74] sm:$0xf] %vm923, %v886
      %954 = vst.msk [vmem:[#allocation2 + $0x78] sm:$0xf] %vm923, %v888
      %955 = vst.msk [vmem:[#allocation2 + $0x7c] sm:$0xf] %vm923, %v890
      %v956 = vld [vmem:[%s730 + $0x2] sm:$0xff]
      %v957 = vld [vmem:[%s730 + $0xa] sm:$0xff]
      %v958 = vld [vmem:[%s730 + $0x1a] sm:$0xff]
      %v959 = vld [vmem:[%s730 + $0x22] sm:$0xff]
      %v960 = vld [vmem:[%s730 + $0x32] sm:$0xff]
      %v961 = vld [vmem:[%s730 + $0x3a] sm:$0xff]
      %v962 = vld [vmem:[%s730 + $0x4a] sm:$0xff]
      %v963 = vld [vmem:[%s730 + $0x52] sm:$0xff]
      %v964 = vld [vmem:[%s730 + $0x62] sm:$0xff]
      %v965 = vld [vmem:[%s730 + $0x6a] sm:$0xff]
      %v966 = vld [vmem:[%s730 + $0x7a] sm:$0xff]
      %v967 = vld [vmem:[%s730 + $0x82] sm:$0xff]
      %v968 = vld [vmem:[%s730 + $0x92] sm:$0xff]
      %v969 = vld [vmem:[%s730 + $0x9a] sm:$0xff]
      %v970 = vld [vmem:[%s730 + $0xaa] sm:$0xff]
      %v971 = vld [vmem:[%s730 + $0xb2] sm:$0xff]
      %v972 = vld [vmem:[%s730 + $0xc2] sm:$0xff]
      %v973 = vld [vmem:[%s730 + $0xca] sm:$0xff]
      %v974 = vld [vmem:[%s730 + $0xda] sm:$0xff]
      %v975 = vld [vmem:[%s730 + $0xe2] sm:$0xff]
      %v976 = vld [vmem:[%s730 + $0xf2] sm:$0xff]
      %v977 = vld [vmem:[%s730 + $0xfa] sm:$0xff]
      %v978 = vld [vmem:[%s730 + $0x10a] sm:$0xff]
      %v979 = vld [vmem:[%s730 + $0x112] sm:$0xff]
      %v980 = vld [vmem:[%s730 + $0x122] sm:$0xff]
      %v981 = vld [vmem:[%s730 + $0x12a] sm:$0xff]
      %v982 = vld [vmem:[%s730 + $0x13a] sm:$0xff]
      %v983 = vld [vmem:[%s730 + $0x142] sm:$0xff]
      %v984 = vld [vmem:[%s730 + $0x152] sm:$0xff]
      %v985 = vld [vmem:[%s730 + $0x15a] sm:$0xff]
      %v986 = vld [vmem:[%s730 + $0x16a] sm:$0xff]
      %v987 = vld [vmem:[%s730 + $0x172] sm:$0xff]
      %v988 = vpack.c.bf16 %v956, %v956
      %v989 = vpack.c.bf16 %v957, %v957
      %v990 = vpack.c.bf16 %v958, %v958
      %v991 = vpack.c.bf16 %v959, %v959
      %v992 = vpack.c.bf16 %v960, %v960
      %v993 = vpack.c.bf16 %v961, %v961
      %v994 = vpack.c.bf16 %v962, %v962
      %v995 = vpack.c.bf16 %v963, %v963
      %v996 = vpack.c.bf16 %v964, %v964
      %v997 = vpack.c.bf16 %v965, %v965
      %v998 = vpack.c.bf16 %v966, %v966
      %v999 = vpack.c.bf16 %v967, %v967
      %v1000 = vpack.c.bf16 %v968, %v968
      %v1001 = vpack.c.bf16 %v969, %v969
      %v1002 = vpack.c.bf16 %v970, %v970
      %v1003 = vpack.c.bf16 %v971, %v971
      %v1004 = vpack.c.bf16 %v972, %v972
      %v1005 = vpack.c.bf16 %v973, %v973
      %v1006 = vpack.c.bf16 %v974, %v974
      %v1007 = vpack.c.bf16 %v975, %v975
      %v1008 = vpack.c.bf16 %v976, %v976
      %v1009 = vpack.c.bf16 %v977, %v977
      %v1010 = vpack.c.bf16 %v978, %v978
      %v1011 = vpack.c.bf16 %v979, %v979
      %v1012 = vpack.c.bf16 %v980, %v980
      %v1013 = vpack.c.bf16 %v981, %v981
      %v1014 = vpack.c.bf16 %v982, %v982
      %v1015 = vpack.c.bf16 %v983, %v983
      %v1016 = vpack.c.bf16 %v984, %v984
      %v1017 = vpack.c.bf16 %v985, %v985
      %v1018 = vpack.c.bf16 %v986, %v986
      %v1019 = vpack.c.bf16 %v987, %v987
      %1052 = vrot.lane.b32.xlu0 %v988, 16
      %v1053 = vpop.permute.xlu0 %1052
      %1054 = vrot.lane.b32.xlu0 %v989, 16
      %v1055 = vpop.permute.xlu0 %1054
      %1056 = vrot.lane.b32.xlu0 %v990, 16
      %v1057 = vpop.permute.xlu0 %1056
      %1058 = vrot.lane.b32.xlu0 %v991, 16
      %v1059 = vpop.permute.xlu0 %1058
      %1060 = vrot.lane.b32.xlu0 %v992, 16
      %v1061 = vpop.permute.xlu0 %1060
      %1062 = vrot.lane.b32.xlu0 %v993, 16
      %v1063 = vpop.permute.xlu0 %1062
      %1064 = vrot.lane.b32.xlu0 %v994, 16
      %v1065 = vpop.permute.xlu0 %1064
      %1066 = vrot.lane.b32.xlu0 %v995, 16
      %v1067 = vpop.permute.xlu0 %1066
      %1068 = vrot.lane.b32.xlu0 %v996, 16
      %v1069 = vpop.permute.xlu0 %1068
      %1070 = vrot.lane.b32.xlu0 %v997, 16
      %v1071 = vpop.permute.xlu0 %1070
      %1072 = vrot.lane.b32.xlu0 %v998, 16
      %v1073 = vpop.permute.xlu0 %1072
      %1074 = vrot.lane.b32.xlu0 %v999, 16
      %v1075 = vpop.permute.xlu0 %1074
      %1076 = vrot.lane.b32.xlu0 %v1000, 16
      %v1077 = vpop.permute.xlu0 %1076
      %1078 = vrot.lane.b32.xlu0 %v1001, 16
      %v1079 = vpop.permute.xlu0 %1078
      %1080 = vrot.lane.b32.xlu0 %v1002, 16
      %v1081 = vpop.permute.xlu0 %1080
      %1082 = vrot.lane.b32.xlu0 %v1003, 16
      %v1083 = vpop.permute.xlu0 %1082
      %1084 = vrot.lane.b32.xlu0 %v1004, 16
      %v1085 = vpop.permute.xlu0 %1084
      %1086 = vrot.lane.b32.xlu0 %v1005, 16
      %v1087 = vpop.permute.xlu0 %1086
      %1088 = vrot.lane.b32.xlu0 %v1006, 16
      %v1089 = vpop.permute.xlu0 %1088
      %1090 = vrot.lane.b32.xlu0 %v1007, 16
      %v1091 = vpop.permute.xlu0 %1090
      %1092 = vrot.lane.b32.xlu0 %v1008, 16
      %v1093 = vpop.permute.xlu0 %1092
      %1094 = vrot.lane.b32.xlu0 %v1009, 16
      %v1095 = vpop.permute.xlu0 %1094
      %1096 = vrot.lane.b32.xlu0 %v1010, 16
      %v1097 = vpop.permute.xlu0 %1096
      %1098 = vrot.lane.b32.xlu0 %v1011, 16
      %v1099 = vpop.permute.xlu0 %1098
      %1100 = vrot.lane.b32.xlu0 %v1012, 16
      %v1101 = vpop.permute.xlu0 %1100
      %1102 = vrot.lane.b32.xlu0 %v1013, 16
      %v1103 = vpop.permute.xlu0 %1102
      %1104 = vrot.lane.b32.xlu0 %v1014, 16
      %v1105 = vpop.permute.xlu0 %1104
      %1106 = vrot.lane.b32.xlu0 %v1015, 16
      %v1107 = vpop.permute.xlu0 %1106
      %1108 = vrot.lane.b32.xlu0 %v1016, 16
      %v1109 = vpop.permute.xlu0 %1108
      %1110 = vrot.lane.b32.xlu0 %v1017, 16
      %v1111 = vpop.permute.xlu0 %1110
      %1112 = vrot.lane.b32.xlu0 %v1018, 16
      %v1113 = vpop.permute.xlu0 %1112
      %1114 = vrot.lane.b32.xlu0 %v1019, 16
      %v1115 = vpop.permute.xlu0 %1114
      %vm1148 = vcmask 158848
      %1149 = vst.msk [vmem:[#allocation2] sm:$0xf] %vm1148, %v1053
      %1150 = vst.msk [vmem:[#allocation2 + $0x4] sm:$0xf] %vm1148, %v1055
      %1151 = vst.msk [vmem:[#allocation2 + $0x8] sm:$0xf] %vm1148, %v1057
      %1152 = vst.msk [vmem:[#allocation2 + $0xc] sm:$0xf] %vm1148, %v1059
      %1153 = vst.msk [vmem:[#allocation2 + $0x10] sm:$0xf] %vm1148, %v1061
      %1154 = vst.msk [vmem:[#allocation2 + $0x14] sm:$0xf] %vm1148, %v1063
      %1155 = vst.msk [vmem:[#allocation2 + $0x18] sm:$0xf] %vm1148, %v1065
      %1156 = vst.msk [vmem:[#allocation2 + $0x1c] sm:$0xf] %vm1148, %v1067
      %1157 = vst.msk [vmem:[#allocation2 + $0x20] sm:$0xf] %vm1148, %v1069
      %1158 = vst.msk [vmem:[#allocation2 + $0x24] sm:$0xf] %vm1148, %v1071
      %1159 = vst.msk [vmem:[#allocation2 + $0x28] sm:$0xf] %vm1148, %v1073
      %1160 = vst.msk [vmem:[#allocation2 + $0x2c] sm:$0xf] %vm1148, %v1075
      %1161 = vst.msk [vmem:[#allocation2 + $0x30] sm:$0xf] %vm1148, %v1077
      %1162 = vst.msk [vmem:[#allocation2 + $0x34] sm:$0xf] %vm1148, %v1079
      %1163 = vst.msk [vmem:[#allocation2 + $0x38] sm:$0xf] %vm1148, %v1081
      %1164 = vst.msk [vmem:[#allocation2 + $0x3c] sm:$0xf] %vm1148, %v1083
      %1165 = vst.msk [vmem:[#allocation2 + $0x40] sm:$0xf] %vm1148, %v1085
      %1166 = vst.msk [vmem:[#allocation2 + $0x44] sm:$0xf] %vm1148, %v1087
      %1167 = vst.msk [vmem:[#allocation2 + $0x48] sm:$0xf] %vm1148, %v1089
      %1168 = vst.msk [vmem:[#allocation2 + $0x4c] sm:$0xf] %vm1148, %v1091
      %1169 = vst.msk [vmem:[#allocation2 + $0x50] sm:$0xf] %vm1148, %v1093
      %1170 = vst.msk [vmem:[#allocation2 + $0x54] sm:$0xf] %vm1148, %v1095
      %1171 = vst.msk [vmem:[#allocation2 + $0x58] sm:$0xf] %vm1148, %v1097
      %1172 = vst.msk [vmem:[#allocation2 + $0x5c] sm:$0xf] %vm1148, %v1099
      %1173 = vst.msk [vmem:[#allocation2 + $0x60] sm:$0xf] %vm1148, %v1101
      %1174 = vst.msk [vmem:[#allocation2 + $0x64] sm:$0xf] %vm1148, %v1103
      %1175 = vst.msk [vmem:[#allocation2 + $0x68] sm:$0xf] %vm1148, %v1105
      %1176 = vst.msk [vmem:[#allocation2 + $0x6c] sm:$0xf] %vm1148, %v1107
      %1177 = vst.msk [vmem:[#allocation2 + $0x70] sm:$0xf] %vm1148, %v1109
      %1178 = vst.msk [vmem:[#allocation2 + $0x74] sm:$0xf] %vm1148, %v1111
      %1179 = vst.msk [vmem:[#allocation2 + $0x78] sm:$0xf] %vm1148, %v1113
      %1180 = vst.msk [vmem:[#allocation2 + $0x7c] sm:$0xf] %vm1148, %v1115
      %v1181 = vld [vmem:[%s730 + $0x4] sm:$0xff]
      %v1182 = vld [vmem:[%s730 + $0xc] sm:$0xff]
      %v1183 = vld [vmem:[%s730 + $0x1c] sm:$0xff]
      %v1184 = vld [vmem:[%s730 + $0x24] sm:$0xff]
      %v1185 = vld [vmem:[%s730 + $0x34] sm:$0xff]
      %v1186 = vld [vmem:[%s730 + $0x3c] sm:$0xff]
      %v1187 = vld [vmem:[%s730 + $0x4c] sm:$0xff]
      %v1188 = vld [vmem:[%s730 + $0x54] sm:$0xff]
      %v1189 = vld [vmem:[%s730 + $0x64] sm:$0xff]
      %v1190 = vld [vmem:[%s730 + $0x6c] sm:$0xff]
      %v1191 = vld [vmem:[%s730 + $0x7c] sm:$0xff]
      %v1192 = vld [vmem:[%s730 + $0x84] sm:$0xff]
      %v1193 = vld [vmem:[%s730 + $0x94] sm:$0xff]
      %v1194 = vld [vmem:[%s730 + $0x9c] sm:$0xff]
      %v1195 = vld [vmem:[%s730 + $0xac] sm:$0xff]
      %v1196 = vld [vmem:[%s730 + $0xb4] sm:$0xff]
      %v1197 = vld [vmem:[%s730 + $0xc4] sm:$0xff]
      %v1198 = vld [vmem:[%s730 + $0xcc] sm:$0xff]
      %v1199 = vld [vmem:[%s730 + $0xdc] sm:$0xff]
      %v1200 = vld [vmem:[%s730 + $0xe4] sm:$0xff]
      %v1201 = vld [vmem:[%s730 + $0xf4] sm:$0xff]
      %v1202 = vld [vmem:[%s730 + $0xfc] sm:$0xff]
      %v1203 = vld [vmem:[%s730 + $0x10c] sm:$0xff]
      %v1204 = vld [vmem:[%s730 + $0x114] sm:$0xff]
      %v1205 = vld [vmem:[%s730 + $0x124] sm:$0xff]
      %v1206 = vld [vmem:[%s730 + $0x12c] sm:$0xff]
      %v1207 = vld [vmem:[%s730 + $0x13c] sm:$0xff]
      %v1208 = vld [vmem:[%s730 + $0x144] sm:$0xff]
      %v1209 = vld [vmem:[%s730 + $0x154] sm:$0xff]
      %v1210 = vld [vmem:[%s730 + $0x15c] sm:$0xff]
      %v1211 = vld [vmem:[%s730 + $0x16c] sm:$0xff]
      %v1212 = vld [vmem:[%s730 + $0x174] sm:$0xff]
      %v1213 = vpack.c.bf16 %v1181, %v1181
      %v1214 = vpack.c.bf16 %v1182, %v1182
      %v1215 = vpack.c.bf16 %v1183, %v1183
      %v1216 = vpack.c.bf16 %v1184, %v1184
      %v1217 = vpack.c.bf16 %v1185, %v1185
      %v1218 = vpack.c.bf16 %v1186, %v1186
      %v1219 = vpack.c.bf16 %v1187, %v1187
      %v1220 = vpack.c.bf16 %v1188, %v1188
      %v1221 = vpack.c.bf16 %v1189, %v1189
      %v1222 = vpack.c.bf16 %v1190, %v1190
      %v1223 = vpack.c.bf16 %v1191, %v1191
      %v1224 = vpack.c.bf16 %v1192, %v1192
      %v1225 = vpack.c.bf16 %v1193, %v1193
      %v1226 = vpack.c.bf16 %v1194, %v1194
      %v1227 = vpack.c.bf16 %v1195, %v1195
      %v1228 = vpack.c.bf16 %v1196, %v1196
      %v1229 = vpack.c.bf16 %v1197, %v1197
      %v1230 = vpack.c.bf16 %v1198, %v1198
      %v1231 = vpack.c.bf16 %v1199, %v1199
      %v1232 = vpack.c.bf16 %v1200, %v1200
      %v1233 = vpack.c.bf16 %v1201, %v1201
      %v1234 = vpack.c.bf16 %v1202, %v1202
      %v1235 = vpack.c.bf16 %v1203, %v1203
      %v1236 = vpack.c.bf16 %v1204, %v1204
      %v1237 = vpack.c.bf16 %v1205, %v1205
      %v1238 = vpack.c.bf16 %v1206, %v1206
      %v1239 = vpack.c.bf16 %v1207, %v1207
      %v1240 = vpack.c.bf16 %v1208, %v1208
      %v1241 = vpack.c.bf16 %v1209, %v1209
      %v1242 = vpack.c.bf16 %v1210, %v1210
      %v1243 = vpack.c.bf16 %v1211, %v1211
      %v1244 = vpack.c.bf16 %v1212, %v1212
      %1277 = vrot.lane.b32.xlu0 %v1213, 20
      %v1278 = vpop.permute.xlu0 %1277
      %1279 = vrot.lane.b32.xlu0 %v1214, 20
      %v1280 = vpop.permute.xlu0 %1279
      %1281 = vrot.lane.b32.xlu0 %v1215, 20
      %v1282 = vpop.permute.xlu0 %1281
      %1283 = vrot.lane.b32.xlu0 %v1216, 20
      %v1284 = vpop.permute.xlu0 %1283
      %1285 = vrot.lane.b32.xlu0 %v1217, 20
      %v1286 = vpop.permute.xlu0 %1285
      %1287 = vrot.lane.b32.xlu0 %v1218, 20
      %v1288 = vpop.permute.xlu0 %1287
      %1289 = vrot.lane.b32.xlu0 %v1219, 20
      %v1290 = vpop.permute.xlu0 %1289
      %1291 = vrot.lane.b32.xlu0 %v1220, 20
      %v1292 = vpop.permute.xlu0 %1291
      %1293 = vrot.lane.b32.xlu0 %v1221, 20
      %v1294 = vpop.permute.xlu0 %1293
      %1295 = vrot.lane.b32.xlu0 %v1222, 20
      %v1296 = vpop.permute.xlu0 %1295
      %1297 = vrot.lane.b32.xlu0 %v1223, 20
      %v1298 = vpop.permute.xlu0 %1297
      %1299 = vrot.lane.b32.xlu0 %v1224, 20
      %v1300 = vpop.permute.xlu0 %1299
      %1301 = vrot.lane.b32.xlu0 %v1225, 20
      %v1302 = vpop.permute.xlu0 %1301
      %1303 = vrot.lane.b32.xlu0 %v1226, 20
      %v1304 = vpop.permute.xlu0 %1303
      %1305 = vrot.lane.b32.xlu0 %v1227, 20
      %v1306 = vpop.permute.xlu0 %1305
      %1307 = vrot.lane.b32.xlu0 %v1228, 20
      %v1308 = vpop.permute.xlu0 %1307
      %1309 = vrot.lane.b32.xlu0 %v1229, 20
      %v1310 = vpop.permute.xlu0 %1309
      %1311 = vrot.lane.b32.xlu0 %v1230, 20
      %v1312 = vpop.permute.xlu0 %1311
      %1313 = vrot.lane.b32.xlu0 %v1231, 20
      %v1314 = vpop.permute.xlu0 %1313
      %1315 = vrot.lane.b32.xlu0 %v1232, 20
      %v1316 = vpop.permute.xlu0 %1315
      %1317 = vrot.lane.b32.xlu0 %v1233, 20
      %v1318 = vpop.permute.xlu0 %1317
      %1319 = vrot.lane.b32.xlu0 %v1234, 20
      %v1320 = vpop.permute.xlu0 %1319
      %1321 = vrot.lane.b32.xlu0 %v1235, 20
      %v1322 = vpop.permute.xlu0 %1321
      %1323 = vrot.lane.b32.xlu0 %v1236, 20
      %v1324 = vpop.permute.xlu0 %1323
      %1325 = vrot.lane.b32.xlu0 %v1237, 20
      %v1326 = vpop.permute.xlu0 %1325
      %1327 = vrot.lane.b32.xlu0 %v1238, 20
      %v1328 = vpop.permute.xlu0 %1327
      %1329 = vrot.lane.b32.xlu0 %v1239, 20
      %v1330 = vpop.permute.xlu0 %1329
      %1331 = vrot.lane.b32.xlu0 %v1240, 20
      %v1332 = vpop.permute.xlu0 %1331
      %1333 = vrot.lane.b32.xlu0 %v1241, 20
      %v1334 = vpop.permute.xlu0 %1333
      %1335 = vrot.lane.b32.xlu0 %v1242, 20
      %v1336 = vpop.permute.xlu0 %1335
      %1337 = vrot.lane.b32.xlu0 %v1243, 20
      %v1338 = vpop.permute.xlu0 %1337
      %1339 = vrot.lane.b32.xlu0 %v1244, 20
      %v1340 = vpop.permute.xlu0 %1339
      %vm1373 = vcmask 191648
      %1374 = vst.msk [vmem:[#allocation2] sm:$0xf] %vm1373, %v1278
      %1375 = vst.msk [vmem:[#allocation2 + $0x4] sm:$0xf] %vm1373, %v1280
      %1376 = vst.msk [vmem:[#allocation2 + $0x8] sm:$0xf] %vm1373, %v1282
      %1377 = vst.msk [vmem:[#allocation2 + $0xc] sm:$0xf] %vm1373, %v1284
      %1378 = vst.msk [vmem:[#allocation2 + $0x10] sm:$0xf] %vm1373, %v1286
      %1379 = vst.msk [vmem:[#allocation2 + $0x14] sm:$0xf] %vm1373, %v1288
      %1380 = vst.msk [vmem:[#allocation2 + $0x18] sm:$0xf] %vm1373, %v1290
      %1381 = vst.msk [vmem:[#allocation2 + $0x1c] sm:$0xf] %vm1373, %v1292
      %1382 = vst.msk [vmem:[#allocation2 + $0x20] sm:$0xf] %vm1373, %v1294
      %1383 = vst.msk [vmem:[#allocation2 + $0x24] sm:$0xf] %vm1373, %v1296
      %1384 = vst.msk [vmem:[#allocation2 + $0x28] sm:$0xf] %vm1373, %v1298
      %1385 = vst.msk [vmem:[#allocation2 + $0x2c] sm:$0xf] %vm1373, %v1300
      %1386 = vst.msk [vmem:[#allocation2 + $0x30] sm:$0xf] %vm1373, %v1302
      %1387 = vst.msk [vmem:[#allocation2 + $0x34] sm:$0xf] %vm1373, %v1304
      %1388 = vst.msk [vmem:[#allocation2 + $0x38] sm:$0xf] %vm1373, %v1306
      %1389 = vst.msk [vmem:[#allocation2 + $0x3c] sm:$0xf] %vm1373, %v1308
      %1390 = vst.msk [vmem:[#allocation2 + $0x40] sm:$0xf] %vm1373, %v1310
      %1391 = vst.msk [vmem:[#allocation2 + $0x44] sm:$0xf] %vm1373, %v1312
      %1392 = vst.msk [vmem:[#allocation2 + $0x48] sm:$0xf] %vm1373, %v1314
      %1393 = vst.msk [vmem:[#allocation2 + $0x4c] sm:$0xf] %vm1373, %v1316
      %1394 = vst.msk [vmem:[#allocation2 + $0x50] sm:$0xf] %vm1373, %v1318
      %1395 = vst.msk [vmem:[#allocation2 + $0x54] sm:$0xf] %vm1373, %v1320
      %1396 = vst.msk [vmem:[#allocation2 + $0x58] sm:$0xf] %vm1373, %v1322
      %1397 = vst.msk [vmem:[#allocation2 + $0x5c] sm:$0xf] %vm1373, %v1324
      %1398 = vst.msk [vmem:[#allocation2 + $0x60] sm:$0xf] %vm1373, %v1326
      %1399 = vst.msk [vmem:[#allocation2 + $0x64] sm:$0xf] %vm1373, %v1328
      %1400 = vst.msk [vmem:[#allocation2 + $0x68] sm:$0xf] %vm1373, %v1330
      %1401 = vst.msk [vmem:[#allocation2 + $0x6c] sm:$0xf] %vm1373, %v1332
      %1402 = vst.msk [vmem:[#allocation2 + $0x70] sm:$0xf] %vm1373, %v1334
      %1403 = vst.msk [vmem:[#allocation2 + $0x74] sm:$0xf] %vm1373, %v1336
      %1404 = vst.msk [vmem:[#allocation2 + $0x78] sm:$0xf] %vm1373, %v1338
      %1405 = vst.msk [vmem:[#allocation2 + $0x7c] sm:$0xf] %vm1373, %v1340
      %s1406 = scalar_lea.vmem %s172, 96
      %v1407 = vld [vmem:[%s1406] sm:$0xff]
      %v1408 = vld [vmem:[%s1406 + $0x8] sm:$0xff]
      %v1409 = vld [vmem:[%s1406 + $0x18] sm:$0xff]
      %v1410 = vld [vmem:[%s1406 + $0x20] sm:$0xff]
      %v1411 = vld [vmem:[%s1406 + $0x30] sm:$0xff]
      %v1412 = vld [vmem:[%s1406 + $0x38] sm:$0xff]
      %v1413 = vld [vmem:[%s1406 + $0x48] sm:$0xff]
      %v1414 = vld [vmem:[%s1406 + $0x50] sm:$0xff]
      %v1415 = vld [vmem:[%s1406 + $0x60] sm:$0xff]
      %v1416 = vld [vmem:[%s1406 + $0x68] sm:$0xff]
      %v1417 = vld [vmem:[%s1406 + $0x78] sm:$0xff]
      %v1418 = vld [vmem:[%s1406 + $0x80] sm:$0xff]
      %v1419 = vld [vmem:[%s1406 + $0x90] sm:$0xff]
      %v1420 = vld [vmem:[%s1406 + $0x98] sm:$0xff]
      %v1421 = vld [vmem:[%s1406 + $0xa8] sm:$0xff]
      %v1422 = vld [vmem:[%s1406 + $0xb0] sm:$0xff]
      %v1423 = vld [vmem:[%s1406 + $0xc0] sm:$0xff]
      %v1424 = vld [vmem:[%s1406 + $0xc8] sm:$0xff]
      %v1425 = vld [vmem:[%s1406 + $0xd8] sm:$0xff]
      %v1426 = vld [vmem:[%s1406 + $0xe0] sm:$0xff]
      %v1427 = vld [vmem:[%s1406 + $0xf0] sm:$0xff]
      %v1428 = vld [vmem:[%s1406 + $0xf8] sm:$0xff]
      %v1429 = vld [vmem:[%s1406 + $0x108] sm:$0xff]
      %v1430 = vld [vmem:[%s1406 + $0x110] sm:$0xff]
      %v1431 = vld [vmem:[%s1406 + $0x120] sm:$0xff]
      %v1432 = vld [vmem:[%s1406 + $0x128] sm:$0xff]
      %v1433 = vld [vmem:[%s1406 + $0x138] sm:$0xff]
      %v1434 = vld [vmem:[%s1406 + $0x140] sm:$0xff]
      %v1435 = vld [vmem:[%s1406 + $0x150] sm:$0xff]
      %v1436 = vld [vmem:[%s1406 + $0x158] sm:$0xff]
      %v1437 = vld [vmem:[%s1406 + $0x168] sm:$0xff]
      %v1438 = vld [vmem:[%s1406 + $0x170] sm:$0xff]
      %v1439 = vpack.c.bf16 %v1407, %v1407
      %v1440 = vpack.c.bf16 %v1408, %v1408
      %v1441 = vpack.c.bf16 %v1409, %v1409
      %v1442 = vpack.c.bf16 %v1410, %v1410
      %v1443 = vpack.c.bf16 %v1411, %v1411
      %v1444 = vpack.c.bf16 %v1412, %v1412
      %v1445 = vpack.c.bf16 %v1413, %v1413
      %v1446 = vpack.c.bf16 %v1414, %v1414
      %v1447 = vpack.c.bf16 %v1415, %v1415
      %v1448 = vpack.c.bf16 %v1416, %v1416
      %v1449 = vpack.c.bf16 %v1417, %v1417
      %v1450 = vpack.c.bf16 %v1418, %v1418
      %v1451 = vpack.c.bf16 %v1419, %v1419
      %v1452 = vpack.c.bf16 %v1420, %v1420
      %v1453 = vpack.c.bf16 %v1421, %v1421
      %v1454 = vpack.c.bf16 %v1422, %v1422
      %v1455 = vpack.c.bf16 %v1423, %v1423
      %v1456 = vpack.c.bf16 %v1424, %v1424
      %v1457 = vpack.c.bf16 %v1425, %v1425
      %v1458 = vpack.c.bf16 %v1426, %v1426
      %v1459 = vpack.c.bf16 %v1427, %v1427
      %v1460 = vpack.c.bf16 %v1428, %v1428
      %v1461 = vpack.c.bf16 %v1429, %v1429
      %v1462 = vpack.c.bf16 %v1430, %v1430
      %v1463 = vpack.c.bf16 %v1431, %v1431
      %v1464 = vpack.c.bf16 %v1432, %v1432
      %v1465 = vpack.c.bf16 %v1433, %v1433
      %v1466 = vpack.c.bf16 %v1434, %v1434
      %v1467 = vpack.c.bf16 %v1435, %v1435
      %v1468 = vpack.c.bf16 %v1436, %v1436
      %v1469 = vpack.c.bf16 %v1437, %v1437
      %v1470 = vpack.c.bf16 %v1438, %v1438
      %1503 = vrot.lane.b32.xlu0 %v1439, 24
      %v1504 = vpop.permute.xlu0 %1503
      %1505 = vrot.lane.b32.xlu0 %v1440, 24
      %v1506 = vpop.permute.xlu0 %1505
      %1507 = vrot.lane.b32.xlu0 %v1441, 24
      %v1508 = vpop.permute.xlu0 %1507
      %1509 = vrot.lane.b32.xlu0 %v1442, 24
      %v1510 = vpop.permute.xlu0 %1509
      %1511 = vrot.lane.b32.xlu0 %v1443, 24
      %v1512 = vpop.permute.xlu0 %1511
      %1513 = vrot.lane.b32.xlu0 %v1444, 24
      %v1514 = vpop.permute.xlu0 %1513
      %1515 = vrot.lane.b32.xlu0 %v1445, 24
      %v1516 = vpop.permute.xlu0 %1515
      %1517 = vrot.lane.b32.xlu0 %v1446, 24
      %v1518 = vpop.permute.xlu0 %1517
      %1519 = vrot.lane.b32.xlu0 %v1447, 24
      %v1520 = vpop.permute.xlu0 %1519
      %1521 = vrot.lane.b32.xlu0 %v1448, 24
      %v1522 = vpop.permute.xlu0 %1521
      %1523 = vrot.lane.b32.xlu0 %v1449, 24
      %v1524 = vpop.permute.xlu0 %1523
      %1525 = vrot.lane.b32.xlu0 %v1450, 24
      %v1526 = vpop.permute.xlu0 %1525
      %1527 = vrot.lane.b32.xlu0 %v1451, 24
      %v1528 = vpop.permute.xlu0 %1527
      %1529 = vrot.lane.b32.xlu0 %v1452, 24
      %v1530 = vpop.permute.xlu0 %1529
      %1531 = vrot.lane.b32.xlu0 %v1453, 24
      %v1532 = vpop.permute.xlu0 %1531
      %1533 = vrot.lane.b32.xlu0 %v1454, 24
      %v1534 = vpop.permute.xlu0 %1533
      %1535 = vrot.lane.b32.xlu0 %v1455, 24
      %v1536 = vpop.permute.xlu0 %1535
      %1537 = vrot.lane.b32.xlu0 %v1456, 24
      %v1538 = vpop.permute.xlu0 %1537
      %1539 = vrot.lane.b32.xlu0 %v1457, 24
      %v1540 = vpop.permute.xlu0 %1539
      %1541 = vrot.lane.b32.xlu0 %v1458, 24
      %v1542 = vpop.permute.xlu0 %1541
      %1543 = vrot.lane.b32.xlu0 %v1459, 24
      %v1544 = vpop.permute.xlu0 %1543
      %1545 = vrot.lane.b32.xlu0 %v1460, 24
      %v1546 = vpop.permute.xlu0 %1545
      %1547 = vrot.lane.b32.xlu0 %v1461, 24
      %v1548 = vpop.permute.xlu0 %1547
      %1549 = vrot.lane.b32.xlu0 %v1462, 24
      %v1550 = vpop.permute.xlu0 %1549
      %1551 = vrot.lane.b32.xlu0 %v1463, 24
      %v1552 = vpop.permute.xlu0 %1551
      %1553 = vrot.lane.b32.xlu0 %v1464, 24
      %v1554 = vpop.permute.xlu0 %1553
      %1555 = vrot.lane.b32.xlu0 %v1465, 24
      %v1556 = vpop.permute.xlu0 %1555
      %1557 = vrot.lane.b32.xlu0 %v1466, 24
      %v1558 = vpop.permute.xlu0 %1557
      %1559 = vrot.lane.b32.xlu0 %v1467, 24
      %v1560 = vpop.permute.xlu0 %1559
      %1561 = vrot.lane.b32.xlu0 %v1468, 24
      %v1562 = vpop.permute.xlu0 %1561
      %1563 = vrot.lane.b32.xlu0 %v1469, 24
      %v1564 = vpop.permute.xlu0 %1563
      %1565 = vrot.lane.b32.xlu0 %v1470, 24
      %v1566 = vpop.permute.xlu0 %1565
      %vm1599 = vcmask 224448
      %1600 = vst.msk [vmem:[#allocation2] sm:$0xf] %vm1599, %v1504
      %1601 = vst.msk [vmem:[#allocation2 + $0x4] sm:$0xf] %vm1599, %v1506
      %1602 = vst.msk [vmem:[#allocation2 + $0x8] sm:$0xf] %vm1599, %v1508
      %1603 = vst.msk [vmem:[#allocation2 + $0xc] sm:$0xf] %vm1599, %v1510
      %1604 = vst.msk [vmem:[#allocation2 + $0x10] sm:$0xf] %vm1599, %v1512
      %1605 = vst.msk [vmem:[#allocation2 + $0x14] sm:$0xf] %vm1599, %v1514
      %1606 = vst.msk [vmem:[#allocation2 + $0x18] sm:$0xf] %vm1599, %v1516
      %1607 = vst.msk [vmem:[#allocation2 + $0x1c] sm:$0xf] %vm1599, %v1518
      %1608 = vst.msk [vmem:[#allocation2 + $0x20] sm:$0xf] %vm1599, %v1520
      %1609 = vst.msk [vmem:[#allocation2 + $0x24] sm:$0xf] %vm1599, %v1522
      %1610 = vst.msk [vmem:[#allocation2 + $0x28] sm:$0xf] %vm1599, %v1524
      %1611 = vst.msk [vmem:[#allocation2 + $0x2c] sm:$0xf] %vm1599, %v1526
      %1612 = vst.msk [vmem:[#allocation2 + $0x30] sm:$0xf] %vm1599, %v1528
      %1613 = vst.msk [vmem:[#allocation2 + $0x34] sm:$0xf] %vm1599, %v1530
      %1614 = vst.msk [vmem:[#allocation2 + $0x38] sm:$0xf] %vm1599, %v1532
      %1615 = vst.msk [vmem:[#allocation2 + $0x3c] sm:$0xf] %vm1599, %v1534
      %1616 = vst.msk [vmem:[#allocation2 + $0x40] sm:$0xf] %vm1599, %v1536
      %1617 = vst.msk [vmem:[#allocation2 + $0x44] sm:$0xf] %vm1599, %v1538
      %1618 = vst.msk [vmem:[#allocation2 + $0x48] sm:$0xf] %vm1599, %v1540
      %1619 = vst.msk [vmem:[#allocation2 + $0x4c] sm:$0xf] %vm1599, %v1542
      %1620 = vst.msk [vmem:[#allocation2 + $0x50] sm:$0xf] %vm1599, %v1544
      %1621 = vst.msk [vmem:[#allocation2 + $0x54] sm:$0xf] %vm1599, %v1546
      %1622 = vst.msk [vmem:[#allocation2 + $0x58] sm:$0xf] %vm1599, %v1548
      %1623 = vst.msk [vmem:[#allocation2 + $0x5c] sm:$0xf] %vm1599, %v1550
      %1624 = vst.msk [vmem:[#allocation2 + $0x60] sm:$0xf] %vm1599, %v1552
      %1625 = vst.msk [vmem:[#allocation2 + $0x64] sm:$0xf] %vm1599, %v1554
      %1626 = vst.msk [vmem:[#allocation2 + $0x68] sm:$0xf] %vm1599, %v1556
      %1627 = vst.msk [vmem:[#allocation2 + $0x6c] sm:$0xf] %vm1599, %v1558
      %1628 = vst.msk [vmem:[#allocation2 + $0x70] sm:$0xf] %vm1599, %v1560
      %1629 = vst.msk [vmem:[#allocation2 + $0x74] sm:$0xf] %vm1599, %v1562
      %1630 = vst.msk [vmem:[#allocation2 + $0x78] sm:$0xf] %vm1599, %v1564
      %1631 = vst.msk [vmem:[#allocation2 + $0x7c] sm:$0xf] %vm1599, %v1566
      %v1632 = vld [vmem:[%s1406 + $0x2] sm:$0xff]
      %v1633 = vld [vmem:[%s1406 + $0xa] sm:$0xff]
      %v1634 = vld [vmem:[%s1406 + $0x1a] sm:$0xff]
      %v1635 = vld [vmem:[%s1406 + $0x22] sm:$0xff]
      %v1636 = vld [vmem:[%s1406 + $0x32] sm:$0xff]
      %v1637 = vld [vmem:[%s1406 + $0x3a] sm:$0xff]
      %v1638 = vld [vmem:[%s1406 + $0x4a] sm:$0xff]
      %v1639 = vld [vmem:[%s1406 + $0x52] sm:$0xff]
      %v1640 = vld [vmem:[%s1406 + $0x62] sm:$0xff]
      %v1641 = vld [vmem:[%s1406 + $0x6a] sm:$0xff]
      %v1642 = vld [vmem:[%s1406 + $0x7a] sm:$0xff]
      %v1643 = vld [vmem:[%s1406 + $0x82] sm:$0xff]
      %v1644 = vld [vmem:[%s1406 + $0x92] sm:$0xff]
      %v1645 = vld [vmem:[%s1406 + $0x9a] sm:$0xff]
      %v1646 = vld [vmem:[%s1406 + $0xaa] sm:$0xff]
      %v1647 = vld [vmem:[%s1406 + $0xb2] sm:$0xff]
      %v1648 = vld [vmem:[%s1406 + $0xc2] sm:$0xff]
      %v1649 = vld [vmem:[%s1406 + $0xca] sm:$0xff]
      %v1650 = vld [vmem:[%s1406 + $0xda] sm:$0xff]
      %v1651 = vld [vmem:[%s1406 + $0xe2] sm:$0xff]
      %v1652 = vld [vmem:[%s1406 + $0xf2] sm:$0xff]
      %v1653 = vld [vmem:[%s1406 + $0xfa] sm:$0xff]
      %v1654 = vld [vmem:[%s1406 + $0x10a] sm:$0xff]
      %v1655 = vld [vmem:[%s1406 + $0x112] sm:$0xff]
      %v1656 = vld [vmem:[%s1406 + $0x122] sm:$0xff]
      %v1657 = vld [vmem:[%s1406 + $0x12a] sm:$0xff]
      %v1658 = vld [vmem:[%s1406 + $0x13a] sm:$0xff]
      %v1659 = vld [vmem:[%s1406 + $0x142] sm:$0xff]
      %v1660 = vld [vmem:[%s1406 + $0x152] sm:$0xff]
      %v1661 = vld [vmem:[%s1406 + $0x15a] sm:$0xff]
      %v1662 = vld [vmem:[%s1406 + $0x16a] sm:$0xff]
      %v1663 = vld [vmem:[%s1406 + $0x172] sm:$0xff]
      %v1664 = vpack.c.bf16 %v1632, %v1632
      %v1665 = vpack.c.bf16 %v1633, %v1633
      %v1666 = vpack.c.bf16 %v1634, %v1634
      %v1667 = vpack.c.bf16 %v1635, %v1635
      %v1668 = vpack.c.bf16 %v1636, %v1636
      %v1669 = vpack.c.bf16 %v1637, %v1637
      %v1670 = vpack.c.bf16 %v1638, %v1638
      %v1671 = vpack.c.bf16 %v1639, %v1639
      %v1672 = vpack.c.bf16 %v1640, %v1640
      %v1673 = vpack.c.bf16 %v1641, %v1641
      %v1674 = vpack.c.bf16 %v1642, %v1642
      %v1675 = vpack.c.bf16 %v1643, %v1643
      %v1676 = vpack.c.bf16 %v1644, %v1644
      %v1677 = vpack.c.bf16 %v1645, %v1645
      %v1678 = vpack.c.bf16 %v1646, %v1646
      %v1679 = vpack.c.bf16 %v1647, %v1647
      %v1680 = vpack.c.bf16 %v1648, %v1648
      %v1681 = vpack.c.bf16 %v1649, %v1649
      %v1682 = vpack.c.bf16 %v1650, %v1650
      %v1683 = vpack.c.bf16 %v1651, %v1651
      %v1684 = vpack.c.bf16 %v1652, %v1652
      %v1685 = vpack.c.bf16 %v1653, %v1653
      %v1686 = vpack.c.bf16 %v1654, %v1654
      %v1687 = vpack.c.bf16 %v1655, %v1655
      %v1688 = vpack.c.bf16 %v1656, %v1656
      %v1689 = vpack.c.bf16 %v1657, %v1657
      %v1690 = vpack.c.bf16 %v1658, %v1658
      %v1691 = vpack.c.bf16 %v1659, %v1659
      %v1692 = vpack.c.bf16 %v1660, %v1660
      %v1693 = vpack.c.bf16 %v1661, %v1661
      %v1694 = vpack.c.bf16 %v1662, %v1662
      %v1695 = vpack.c.bf16 %v1663, %v1663
      %1728 = vrot.lane.b32.xlu0 %v1664, 28
      %v1729 = vpop.permute.xlu0 %1728
      %1730 = vrot.lane.b32.xlu0 %v1665, 28
      %v1731 = vpop.permute.xlu0 %1730
      %1732 = vrot.lane.b32.xlu0 %v1666, 28
      %v1733 = vpop.permute.xlu0 %1732
      %1734 = vrot.lane.b32.xlu0 %v1667, 28
      %v1735 = vpop.permute.xlu0 %1734
      %1736 = vrot.lane.b32.xlu0 %v1668, 28
      %v1737 = vpop.permute.xlu0 %1736
      %1738 = vrot.lane.b32.xlu0 %v1669, 28
      %v1739 = vpop.permute.xlu0 %1738
      %1740 = vrot.lane.b32.xlu0 %v1670, 28
      %v1741 = vpop.permute.xlu0 %1740
      %1742 = vrot.lane.b32.xlu0 %v1671, 28
      %v1743 = vpop.permute.xlu0 %1742
      %1744 = vrot.lane.b32.xlu0 %v1672, 28
      %v1745 = vpop.permute.xlu0 %1744
      %1746 = vrot.lane.b32.xlu0 %v1673, 28
      %v1747 = vpop.permute.xlu0 %1746
      %1748 = vrot.lane.b32.xlu0 %v1674, 28
      %v1749 = vpop.permute.xlu0 %1748
      %1750 = vrot.lane.b32.xlu0 %v1675, 28
      %v1751 = vpop.permute.xlu0 %1750
      %1752 = vrot.lane.b32.xlu0 %v1676, 28
      %v1753 = vpop.permute.xlu0 %1752
      %1754 = vrot.lane.b32.xlu0 %v1677, 28
      %v1755 = vpop.permute.xlu0 %1754
      %1756 = vrot.lane.b32.xlu0 %v1678, 28
      %v1757 = vpop.permute.xlu0 %1756
      %1758 = vrot.lane.b32.xlu0 %v1679, 28
      %v1759 = vpop.permute.xlu0 %1758
      %1760 = vrot.lane.b32.xlu0 %v1680, 28
      %v1761 = vpop.permute.xlu0 %1760
      %1762 = vrot.lane.b32.xlu0 %v1681, 28
      %v1763 = vpop.permute.xlu0 %1762
      %1764 = vrot.lane.b32.xlu0 %v1682, 28
      %v1765 = vpop.permute.xlu0 %1764
      %1766 = vrot.lane.b32.xlu0 %v1683, 28
      %v1767 = vpop.permute.xlu0 %1766
      %1768 = vrot.lane.b32.xlu0 %v1684, 28
      %v1769 = vpop.permute.xlu0 %1768
      %1770 = vrot.lane.b32.xlu0 %v1685, 28
      %v1771 = vpop.permute.xlu0 %1770
      %1772 = vrot.lane.b32.xlu0 %v1686, 28
      %v1773 = vpop.permute.xlu0 %1772
      %1774 = vrot.lane.b32.xlu0 %v1687, 28
      %v1775 = vpop.permute.xlu0 %1774
      %1776 = vrot.lane.b32.xlu0 %v1688, 28
      %v1777 = vpop.permute.xlu0 %1776
      %1778 = vrot.lane.b32.xlu0 %v1689, 28
      %v1779 = vpop.permute.xlu0 %1778
      %1780 = vrot.lane.b32.xlu0 %v1690, 28
      %v1781 = vpop.permute.xlu0 %1780
      %1782 = vrot.lane.b32.xlu0 %v1691, 28
      %v1783 = vpop.permute.xlu0 %1782
      %1784 = vrot.lane.b32.xlu0 %v1692, 28
      %v1785 = vpop.permute.xlu0 %1784
      %1786 = vrot.lane.b32.xlu0 %v1693, 28
      %v1787 = vpop.permute.xlu0 %1786
      %1788 = vrot.lane.b32.xlu0 %v1694, 28
      %v1789 = vpop.permute.xlu0 %1788
      %1790 = vrot.lane.b32.xlu0 %v1695, 28
      %v1791 = vpop.permute.xlu0 %1790
      %vm1824 = vcmask 257248
      %1825 = vst.msk [vmem:[#allocation2] sm:$0xf] %vm1824, %v1729
      %1826 = vst.msk [vmem:[#allocation2 + $0x4] sm:$0xf] %vm1824, %v1731
      %1827 = vst.msk [vmem:[#allocation2 + $0x8] sm:$0xf] %vm1824, %v1733
      %1828 = vst.msk [vmem:[#allocation2 + $0xc] sm:$0xf] %vm1824, %v1735
      %1829 = vst.msk [vmem:[#allocation2 + $0x10] sm:$0xf] %vm1824, %v1737
      %1830 = vst.msk [vmem:[#allocation2 + $0x14] sm:$0xf] %vm1824, %v1739
      %1831 = vst.msk [vmem:[#allocation2 + $0x18] sm:$0xf] %vm1824, %v1741
      %1832 = vst.msk [vmem:[#allocation2 + $0x1c] sm:$0xf] %vm1824, %v1743
      %1833 = vst.msk [vmem:[#allocation2 + $0x20] sm:$0xf] %vm1824, %v1745
      %1834 = vst.msk [vmem:[#allocation2 + $0x24] sm:$0xf] %vm1824, %v1747
      %1835 = vst.msk [vmem:[#allocation2 + $0x28] sm:$0xf] %vm1824, %v1749
      %1836 = vst.msk [vmem:[#allocation2 + $0x2c] sm:$0xf] %vm1824, %v1751
      %1837 = vst.msk [vmem:[#allocation2 + $0x30] sm:$0xf] %vm1824, %v1753
      %1838 = vst.msk [vmem:[#allocation2 + $0x34] sm:$0xf] %vm1824, %v1755
      %1839 = vst.msk [vmem:[#allocation2 + $0x38] sm:$0xf] %vm1824, %v1757
      %1840 = vst.msk [vmem:[#allocation2 + $0x3c] sm:$0xf] %vm1824, %v1759
      %1841 = vst.msk [vmem:[#allocation2 + $0x40] sm:$0xf] %vm1824, %v1761
      %1842 = vst.msk [vmem:[#allocation2 + $0x44] sm:$0xf] %vm1824, %v1763
      %1843 = vst.msk [vmem:[#allocation2 + $0x48] sm:$0xf] %vm1824, %v1765
      %1844 = vst.msk [vmem:[#allocation2 + $0x4c] sm:$0xf] %vm1824, %v1767
      %1845 = vst.msk [vmem:[#allocation2 + $0x50] sm:$0xf] %vm1824, %v1769
      %1846 = vst.msk [vmem:[#allocation2 + $0x54] sm:$0xf] %vm1824, %v1771
      %1847 = vst.msk [vmem:[#allocation2 + $0x58] sm:$0xf] %vm1824, %v1773
      %1848 = vst.msk [vmem:[#allocation2 + $0x5c] sm:$0xf] %vm1824, %v1775
      %1849 = vst.msk [vmem:[#allocation2 + $0x60] sm:$0xf] %vm1824, %v1777
      %1850 = vst.msk [vmem:[#allocation2 + $0x64] sm:$0xf] %vm1824, %v1779
      %1851 = vst.msk [vmem:[#allocation2 + $0x68] sm:$0xf] %vm1824, %v1781
      %1852 = vst.msk [vmem:[#allocation2 + $0x6c] sm:$0xf] %vm1824, %v1783
      %1853 = vst.msk [vmem:[#allocation2 + $0x70] sm:$0xf] %vm1824, %v1785
      %1854 = vst.msk [vmem:[#allocation2 + $0x74] sm:$0xf] %vm1824, %v1787
      %1855 = vst.msk [vmem:[#allocation2 + $0x78] sm:$0xf] %vm1824, %v1789
      %1856 = vst.msk [vmem:[#allocation2 + $0x7c] sm:$0xf] %vm1824, %v1791
      %v1857 = vld [vmem:[%s1406 + $0x4] sm:$0xff]
      %v1858 = vld [vmem:[%s1406 + $0xc] sm:$0xff]
      %v1859 = vld [vmem:[%s1406 + $0x1c] sm:$0xff]
      %v1860 = vld [vmem:[%s1406 + $0x24] sm:$0xff]
      %v1861 = vld [vmem:[%s1406 + $0x34] sm:$0xff]
      %v1862 = vld [vmem:[%s1406 + $0x3c] sm:$0xff]
      %v1863 = vld [vmem:[%s1406 + $0x4c] sm:$0xff]
      %v1864 = vld [vmem:[%s1406 + $0x54] sm:$0xff]
      %v1865 = vld [vmem:[%s1406 + $0x64] sm:$0xff]
      %v1866 = vld [vmem:[%s1406 + $0x6c] sm:$0xff]
      %v1867 = vld [vmem:[%s1406 + $0x7c] sm:$0xff]
      %v1868 = vld [vmem:[%s1406 + $0x84] sm:$0xff]
      %v1869 = vld [vmem:[%s1406 + $0x94] sm:$0xff]
      %v1870 = vld [vmem:[%s1406 + $0x9c] sm:$0xff]
      %v1871 = vld [vmem:[%s1406 + $0xac] sm:$0xff]
      %v1872 = vld [vmem:[%s1406 + $0xb4] sm:$0xff]
      %v1873 = vld [vmem:[%s1406 + $0xc4] sm:$0xff]
      %v1874 = vld [vmem:[%s1406 + $0xcc] sm:$0xff]
      %v1875 = vld [vmem:[%s1406 + $0xdc] sm:$0xff]
      %v1876 = vld [vmem:[%s1406 + $0xe4] sm:$0xff]
      %v1877 = vld [vmem:[%s1406 + $0xf4] sm:$0xff]
      %v1878 = vld [vmem:[%s1406 + $0xfc] sm:$0xff]
      %v1879 = vld [vmem:[%s1406 + $0x10c] sm:$0xff]
      %v1880 = vld [vmem:[%s1406 + $0x114] sm:$0xff]
      %v1881 = vld [vmem:[%s1406 + $0x124] sm:$0xff]
      %v1882 = vld [vmem:[%s1406 + $0x12c] sm:$0xff]
      %v1883 = vld [vmem:[%s1406 + $0x13c] sm:$0xff]
      %v1884 = vld [vmem:[%s1406 + $0x144] sm:$0xff]
      %v1885 = vld [vmem:[%s1406 + $0x154] sm:$0xff]
      %v1886 = vld [vmem:[%s1406 + $0x15c] sm:$0xff]
      %v1887 = vld [vmem:[%s1406 + $0x16c] sm:$0xff]
      %v1888 = vld [vmem:[%s1406 + $0x174] sm:$0xff]
      %v1889 = vpack.c.bf16 %v1857, %v1857
      %v1890 = vpack.c.bf16 %v1858, %v1858
      %v1891 = vpack.c.bf16 %v1859, %v1859
      %v1892 = vpack.c.bf16 %v1860, %v1860
      %v1893 = vpack.c.bf16 %v1861, %v1861
      %v1894 = vpack.c.bf16 %v1862, %v1862
      %v1895 = vpack.c.bf16 %v1863, %v1863
      %v1896 = vpack.c.bf16 %v1864, %v1864
      %v1897 = vpack.c.bf16 %v1865, %v1865
      %v1898 = vpack.c.bf16 %v1866, %v1866
      %v1899 = vpack.c.bf16 %v1867, %v1867
      %v1900 = vpack.c.bf16 %v1868, %v1868
      %v1901 = vpack.c.bf16 %v1869, %v1869
      %v1902 = vpack.c.bf16 %v1870, %v1870
      %v1903 = vpack.c.bf16 %v1871, %v1871
      %v1904 = vpack.c.bf16 %v1872, %v1872
      %v1905 = vpack.c.bf16 %v1873, %v1873
      %v1906 = vpack.c.bf16 %v1874, %v1874
      %v1907 = vpack.c.bf16 %v1875, %v1875
      %v1908 = vpack.c.bf16 %v1876, %v1876
      %v1909 = vpack.c.bf16 %v1877, %v1877
      %v1910 = vpack.c.bf16 %v1878, %v1878
      %v1911 = vpack.c.bf16 %v1879, %v1879
      %v1912 = vpack.c.bf16 %v1880, %v1880
      %v1913 = vpack.c.bf16 %v1881, %v1881
      %v1914 = vpack.c.bf16 %v1882, %v1882
      %v1915 = vpack.c.bf16 %v1883, %v1883
      %v1916 = vpack.c.bf16 %v1884, %v1884
      %v1917 = vpack.c.bf16 %v1885, %v1885
      %v1918 = vpack.c.bf16 %v1886, %v1886
      %v1919 = vpack.c.bf16 %v1887, %v1887
      %v1920 = vpack.c.bf16 %v1888, %v1888
      %1953 = vrot.lane.b32.xlu0 %v1889, 32
      %v1954 = vpop.permute.xlu0 %1953
      %1955 = vrot.lane.b32.xlu0 %v1890, 32
      %v1956 = vpop.permute.xlu0 %1955
      %1957 = vrot.lane.b32.xlu0 %v1891, 32
      %v1958 = vpop.permute.xlu0 %1957
      %1959 = vrot.lane.b32.xlu0 %v1892, 32
      %v1960 = vpop.permute.xlu0 %1959
      %1961 = vrot.lane.b32.xlu0 %v1893, 32
      %v1962 = vpop.permute.xlu0 %1961
      %1963 = vrot.lane.b32.xlu0 %v1894, 32
      %v1964 = vpop.permute.xlu0 %1963
      %1965 = vrot.lane.b32.xlu0 %v1895, 32
      %v1966 = vpop.permute.xlu0 %1965
      %1967 = vrot.lane.b32.xlu0 %v1896, 32
      %v1968 = vpop.permute.xlu0 %1967
      %1969 = vrot.lane.b32.xlu0 %v1897, 32
      %v1970 = vpop.permute.xlu0 %1969
      %1971 = vrot.lane.b32.xlu0 %v1898, 32
      %v1972 = vpop.permute.xlu0 %1971
      %1973 = vrot.lane.b32.xlu0 %v1899, 32
      %v1974 = vpop.permute.xlu0 %1973
      %1975 = vrot.lane.b32.xlu0 %v1900, 32
      %v1976 = vpop.permute.xlu0 %1975
      %1977 = vrot.lane.b32.xlu0 %v1901, 32
      %v1978 = vpop.permute.xlu0 %1977
      %1979 = vrot.lane.b32.xlu0 %v1902, 32
      %v1980 = vpop.permute.xlu0 %1979
      %1981 = vrot.lane.b32.xlu0 %v1903, 32
      %v1982 = vpop.permute.xlu0 %1981
      %1983 = vrot.lane.b32.xlu0 %v1904, 32
      %v1984 = vpop.permute.xlu0 %1983
      %1985 = vrot.lane.b32.xlu0 %v1905, 32
      %v1986 = vpop.permute.xlu0 %1985
      %1987 = vrot.lane.b32.xlu0 %v1906, 32
      %v1988 = vpop.permute.xlu0 %1987
      %1989 = vrot.lane.b32.xlu0 %v1907, 32
      %v1990 = vpop.permute.xlu0 %1989
      %1991 = vrot.lane.b32.xlu0 %v1908, 32
      %v1992 = vpop.permute.xlu0 %1991
      %1993 = vrot.lane.b32.xlu0 %v1909, 32
      %v1994 = vpop.permute.xlu0 %1993
      %1995 = vrot.lane.b32.xlu0 %v1910, 32
      %v1996 = vpop.permute.xlu0 %1995
      %1997 = vrot.lane.b32.xlu0 %v1911, 32
      %v1998 = vpop.permute.xlu0 %1997
      %1999 = vrot.lane.b32.xlu0 %v1912, 32
      %v2000 = vpop.permute.xlu0 %1999
      %2001 = vrot.lane.b32.xlu0 %v1913, 32
      %v2002 = vpop.permute.xlu0 %2001
      %2003 = vrot.lane.b32.xlu0 %v1914, 32
      %v2004 = vpop.permute.xlu0 %2003
      %2005 = vrot.lane.b32.xlu0 %v1915, 32
      %v2006 = vpop.permute.xlu0 %2005
      %2007 = vrot.lane.b32.xlu0 %v1916, 32
      %v2008 = vpop.permute.xlu0 %2007
      %2009 = vrot.lane.b32.xlu0 %v1917, 32
      %v2010 = vpop.permute.xlu0 %2009
      %2011 = vrot.lane.b32.xlu0 %v1918, 32
      %v2012 = vpop.permute.xlu0 %2011
      %2013 = vrot.lane.b32.xlu0 %v1919, 32
      %v2014 = vpop.permute.xlu0 %2013
      %2015 = vrot.lane.b32.xlu0 %v1920, 32
      %v2016 = vpop.permute.xlu0 %2015
      %vm2049 = vcmask 290048
      %2050 = vst.msk [vmem:[#allocation2] sm:$0xf] %vm2049, %v1954
      %2051 = vst.msk [vmem:[#allocation2 + $0x4] sm:$0xf] %vm2049, %v1956
      %2052 = vst.msk [vmem:[#allocation2 + $0x8] sm:$0xf] %vm2049, %v1958
      %2053 = vst.msk [vmem:[#allocation2 + $0xc] sm:$0xf] %vm2049, %v1960
      %2054 = vst.msk [vmem:[#allocation2 + $0x10] sm:$0xf] %vm2049, %v1962
      %2055 = vst.msk [vmem:[#allocation2 + $0x14] sm:$0xf] %vm2049, %v1964
      %2056 = vst.msk [vmem:[#allocation2 + $0x18] sm:$0xf] %vm2049, %v1966
      %2057 = vst.msk [vmem:[#allocation2 + $0x1c] sm:$0xf] %vm2049, %v1968
      %2058 = vst.msk [vmem:[#allocation2 + $0x20] sm:$0xf] %vm2049, %v1970
      %2059 = vst.msk [vmem:[#allocation2 + $0x24] sm:$0xf] %vm2049, %v1972
      %2060 = vst.msk [vmem:[#allocation2 + $0x28] sm:$0xf] %vm2049, %v1974
      %2061 = vst.msk [vmem:[#allocation2 + $0x2c] sm:$0xf] %vm2049, %v1976
      %2062 = vst.msk [vmem:[#allocation2 + $0x30] sm:$0xf] %vm2049, %v1978
      %2063 = vst.msk [vmem:[#allocation2 + $0x34] sm:$0xf] %vm2049, %v1980
      %2064 = vst.msk [vmem:[#allocation2 + $0x38] sm:$0xf] %vm2049, %v1982
      %2065 = vst.msk [vmem:[#allocation2 + $0x3c] sm:$0xf] %vm2049, %v1984
      %2066 = vst.msk [vmem:[#allocation2 + $0x40] sm:$0xf] %vm2049, %v1986
      %2067 = vst.msk [vmem:[#allocation2 + $0x44] sm:$0xf] %vm2049, %v1988
      %2068 = vst.msk [vmem:[#allocation2 + $0x48] sm:$0xf] %vm2049, %v1990
      %2069 = vst.msk [vmem:[#allocation2 + $0x4c] sm:$0xf] %vm2049, %v1992
      %2070 = vst.msk [vmem:[#allocation2 + $0x50] sm:$0xf] %vm2049, %v1994
      %2071 = vst.msk [vmem:[#allocation2 + $0x54] sm:$0xf] %vm2049, %v1996
      %2072 = vst.msk [vmem:[#allocation2 + $0x58] sm:$0xf] %vm2049, %v1998
      %2073 = vst.msk [vmem:[#allocation2 + $0x5c] sm:$0xf] %vm2049, %v2000
      %2074 = vst.msk [vmem:[#allocation2 + $0x60] sm:$0xf] %vm2049, %v2002
      %2075 = vst.msk [vmem:[#allocation2 + $0x64] sm:$0xf] %vm2049, %v2004
      %2076 = vst.msk [vmem:[#allocation2 + $0x68] sm:$0xf] %vm2049, %v2006
      %2077 = vst.msk [vmem:[#allocation2 + $0x6c] sm:$0xf] %vm2049, %v2008
      %2078 = vst.msk [vmem:[#allocation2 + $0x70] sm:$0xf] %vm2049, %v2010
      %2079 = vst.msk [vmem:[#allocation2 + $0x74] sm:$0xf] %vm2049, %v2012
      %2080 = vst.msk [vmem:[#allocation2 + $0x78] sm:$0xf] %vm2049, %v2014
      %2081 = vst.msk [vmem:[#allocation2 + $0x7c] sm:$0xf] %vm2049, %v2016
      %v2082 = vld [vmem:[#allocation2] sm:$0xf]
      %v2083 = vld [vmem:[#allocation2 + $0x4] sm:$0xf]
      %v2084 = vld [vmem:[#allocation2 + $0x8] sm:$0xf]
      %v2085 = vld [vmem:[#allocation2 + $0xc] sm:$0xf]
      %v2086 = vld [vmem:[#allocation2 + $0x10] sm:$0xf]
      %v2087 = vld [vmem:[#allocation2 + $0x14] sm:$0xf]
      %v2088 = vld [vmem:[#allocation2 + $0x18] sm:$0xf]
      %v2089 = vld [vmem:[#allocation2 + $0x1c] sm:$0xf]
      %v2090 = vld [vmem:[#allocation2 + $0x20] sm:$0xf]
      %v2091 = vld [vmem:[#allocation2 + $0x24] sm:$0xf]
      %v2092 = vld [vmem:[#allocation2 + $0x28] sm:$0xf]
      %v2093 = vld [vmem:[#allocation2 + $0x2c] sm:$0xf]
      %v2094 = vld [vmem:[#allocation2 + $0x30] sm:$0xf]
      %v2095 = vld [vmem:[#allocation2 + $0x34] sm:$0xf]
      %v2096 = vld [vmem:[#allocation2 + $0x38] sm:$0xf]
      %v2097 = vld [vmem:[#allocation2 + $0x3c] sm:$0xf]
      %v2098 = vld [vmem:[#allocation2 + $0x40] sm:$0xf]
      %v2099 = vld [vmem:[#allocation2 + $0x44] sm:$0xf]
      %v2100 = vld [vmem:[#allocation2 + $0x48] sm:$0xf]
      %v2101 = vld [vmem:[#allocation2 + $0x4c] sm:$0xf]
      %v2102 = vld [vmem:[#allocation2 + $0x50] sm:$0xf]
      %v2103 = vld [vmem:[#allocation2 + $0x54] sm:$0xf]
      %v2104 = vld [vmem:[#allocation2 + $0x58] sm:$0xf]
      %v2105 = vld [vmem:[#allocation2 + $0x5c] sm:$0xf]
      %v2106 = vld [vmem:[#allocation2 + $0x60] sm:$0xf]
      %v2107 = vld [vmem:[#allocation2 + $0x64] sm:$0xf]
      %v2108 = vld [vmem:[#allocation2 + $0x68] sm:$0xf]
      %v2109 = vld [vmem:[#allocation2 + $0x6c] sm:$0xf]
      %v2110 = vld [vmem:[#allocation2 + $0x70] sm:$0xf]
      %v2111 = vld [vmem:[#allocation2 + $0x74] sm:$0xf]
      %v2112 = vld [vmem:[#allocation2 + $0x78] sm:$0xf]
      %v2113 = vld [vmem:[#allocation2 + $0x7c] sm:$0xf]
      %v2114 = vld [vmem:[%s1] sm:$0xf]
      %v2115 = vld [vmem:[%s1 + $0x4] sm:$0xf]
      %v2116 = vld [vmem:[%s1 + $0x8] sm:$0xf]
      %v2117 = vld [vmem:[%s1 + $0xc] sm:$0xf]
      %v2118 = vld [vmem:[%s1 + $0x10] sm:$0x3]
      %v2151 = vunpack.c.l.b16 %v2082
      %v2152 = vunpack.c.l.b16 %v2083
      %v2153 = vunpack.c.l.b16 %v2084
      %v2154 = vunpack.c.l.b16 %v2085
      %v2155 = vunpack.c.l.b16 %v2086
      %v2156 = vunpack.c.l.b16 %v2087
      %v2157 = vunpack.c.l.b16 %v2088
      %v2158 = vunpack.c.l.b16 %v2089
      %v2159 = vunpack.c.l.b16 %v2090
      %v2160 = vunpack.c.l.b16 %v2091
      %v2161 = vunpack.c.l.b16 %v2092
      %v2162 = vunpack.c.l.b16 %v2093
      %v2163 = vunpack.c.l.b16 %v2094
      %v2164 = vunpack.c.l.b16 %v2095
      %v2165 = vunpack.c.l.b16 %v2096
      %v2166 = vunpack.c.l.b16 %v2097
      %v2167 = vunpack.c.l.b16 %v2098
      %v2168 = vunpack.c.l.b16 %v2099
      %v2169 = vunpack.c.l.b16 %v2100
      %v2170 = vunpack.c.l.b16 %v2101
      %v2171 = vunpack.c.l.b16 %v2102
      %v2172 = vunpack.c.l.b16 %v2103
      %v2173 = vunpack.c.l.b16 %v2104
      %v2174 = vunpack.c.l.b16 %v2105
      %v2175 = vunpack.c.l.b16 %v2106
      %v2176 = vunpack.c.l.b16 %v2107
      %v2177 = vunpack.c.l.b16 %v2108
      %v2178 = vunpack.c.l.b16 %v2109
      %v2179 = vunpack.c.l.b16 %v2110
      %v2180 = vunpack.c.l.b16 %v2111
      %v2181 = vunpack.c.l.b16 %v2112
      %v2182 = vunpack.c.l.b16 %v2113
      %v2183 = vpack.c.b16 %v2152, %v2151
      %v2184 = vpack.c.b16 %v2154, %v2153
      %v2185 = vpack.c.b16 %v2156, %v2155
      %v2186 = vpack.c.b16 %v2158, %v2157
      %v2187 = vpack.c.b16 %v2160, %v2159
      %v2188 = vpack.c.b16 %v2162, %v2161
      %v2189 = vpack.c.b16 %v2164, %v2163
      %v2190 = vpack.c.b16 %v2166, %v2165
      %v2191 = vpack.c.b16 %v2168, %v2167
      %v2192 = vpack.c.b16 %v2170, %v2169
      %v2193 = vpack.c.b16 %v2172, %v2171
      %v2194 = vpack.c.b16 %v2174, %v2173
      %v2195 = vpack.c.b16 %v2176, %v2175
      %v2196 = vpack.c.b16 %v2178, %v2177
      %v2197 = vpack.c.b16 %v2180, %v2179
      %v2198 = vpack.c.b16 %v2182, %v2181
      %v2204 = vunpack.c.l.b16 %v2114
      %v2205 = vunpack.c.l.b16 %v2115
      %v2206 = vunpack.c.l.b16 %v2116
      %v2207 = vunpack.c.l.b16 %v2117
      %v2208 = vunpack.c.l.b16 %v2118
      %v2209 = vpack.c.b16 %v2205, %v2204
      %v2210 = vpack.c.b16 %v2207, %v2206
      %v2211 = vpack.c.b16 %v2208, %v2208
      %vm2214 = vcmask 293888
      %v2216 = vsel %vm2214, %v2183, 0
      %v2219 = vsel %vm2214, %v2184, 0
      %v2222 = vsel %vm2214, %v2185, 0
      %v2225 = vsel %vm2214, %v2186, 0
      %v2228 = vsel %vm2214, %v2187, 0
      %v2231 = vsel %vm2214, %v2188, 0
      %v2234 = vsel %vm2214, %v2189, 0
      %v2237 = vsel %vm2214, %v2190, 0
      %v2240 = vsel %vm2214, %v2191, 0
      %v2243 = vsel %vm2214, %v2192, 0
      %v2246 = vsel %vm2214, %v2193, 0
      %v2249 = vsel %vm2214, %v2194, 0
      %v2252 = vsel %vm2214, %v2195, 0
      %v2255 = vsel %vm2214, %v2196, 0
      %v2258 = vsel %vm2214, %v2197, 0
      %v2261 = vsel %vm2214, %v2198, 0
      %vm2263 = vcmask 1041408
      %v2265 = vsel %vm2263, %v2211, 0
      %2267 = vmatpush.bf16.msra.mxu0 0
      %2268 = vmatpush.bf16.msra.mxu0 0
      %2269 = vmatpush.bf16.msra.mxu0 0
      %2270 = vmatpush.bf16.msra.mxu0 0
      %2271 = vmatpush.bf16.msra.mxu0 0
      %2272 = vmatpush.bf16.msra.mxu0 %v2265
      %2273 = vmatpush.bf16.msra.mxu0 %v2210
      %2274 = vmatpush.bf16.msra.mxu0 %v2209
      %2275 = vmatmul.bf16.gmra.mxu0 %v2216
      %v2276 = vpop.f32.mrf.mxu0
      %v2277 = vadd.f32 0.0, %v2276
      %v2278 = vpop.f32.mrf.mxu0
      %v2279 = vadd.f32 0.0, %v2278
      %2280 = vmatmul.bf16.gmra.mxu0 %v2219
      %v2281 = vpop.f32.mrf.mxu0
      %v2282 = vadd.f32 0.0, %v2281
      %v2283 = vpop.f32.mrf.mxu0
      %v2284 = vadd.f32 0.0, %v2283
      %2285 = vmatmul.bf16.gmra.mxu0 %v2222
      %v2286 = vpop.f32.mrf.mxu0
      %v2287 = vadd.f32 0.0, %v2286
      %v2288 = vpop.f32.mrf.mxu0
      %v2289 = vadd.f32 0.0, %v2288
      %2290 = vmatmul.bf16.gmra.mxu0 %v2225
      %v2291 = vpop.f32.mrf.mxu0
      %v2292 = vadd.f32 0.0, %v2291
      %v2293 = vpop.f32.mrf.mxu0
      %v2294 = vadd.f32 0.0, %v2293
      %2295 = vmatmul.bf16.gmra.mxu0 %v2228
      %v2296 = vpop.f32.mrf.mxu0
      %v2297 = vadd.f32 0.0, %v2296
      %v2298 = vpop.f32.mrf.mxu0
      %v2299 = vadd.f32 0.0, %v2298
      %2300 = vmatmul.bf16.gmra.mxu0 %v2231
      %v2301 = vpop.f32.mrf.mxu0
      %v2302 = vadd.f32 0.0, %v2301
      %v2303 = vpop.f32.mrf.mxu0
      %v2304 = vadd.f32 0.0, %v2303
      %2305 = vmatmul.bf16.gmra.mxu0 %v2234
      %v2306 = vpop.f32.mrf.mxu0
      %v2307 = vadd.f32 0.0, %v2306
      %v2308 = vpop.f32.mrf.mxu0
      %v2309 = vadd.f32 0.0, %v2308
      %2310 = vmatmul.bf16.gmra.mxu0 %v2237
      %v2311 = vpop.f32.mrf.mxu0
      %v2312 = vadd.f32 0.0, %v2311
      %v2313 = vpop.f32.mrf.mxu0
      %v2314 = vadd.f32 0.0, %v2313
      %2315 = vmatmul.bf16.gmra.mxu0 %v2240
      %v2316 = vpop.f32.mrf.mxu0
      %v2317 = vadd.f32 0.0, %v2316
      %v2318 = vpop.f32.mrf.mxu0
      %v2319 = vadd.f32 0.0, %v2318
      %2320 = vmatmul.bf16.gmra.mxu0 %v2243
      %v2321 = vpop.f32.mrf.mxu0
      %v2322 = vadd.f32 0.0, %v2321
      %v2323 = vpop.f32.mrf.mxu0
      %v2324 = vadd.f32 0.0, %v2323
      %2325 = vmatmul.bf16.gmra.mxu0 %v2246
      %v2326 = vpop.f32.mrf.mxu0
      %v2327 = vadd.f32 0.0, %v2326
      %v2328 = vpop.f32.mrf.mxu0
      %v2329 = vadd.f32 0.0, %v2328
      %2330 = vmatmul.bf16.gmra.mxu0 %v2249
      %v2331 = vpop.f32.mrf.mxu0
      %v2332 = vadd.f32 0.0, %v2331
      %v2333 = vpop.f32.mrf.mxu0
      %v2334 = vadd.f32 0.0, %v2333
      %2335 = vmatmul.bf16.gmra.mxu0 %v2252
      %v2336 = vpop.f32.mrf.mxu0
      %v2337 = vadd.f32 0.0, %v2336
      %v2338 = vpop.f32.mrf.mxu0
      %v2339 = vadd.f32 0.0, %v2338
      %2340 = vmatmul.bf16.gmra.mxu0 %v2255
      %v2341 = vpop.f32.mrf.mxu0
      %v2342 = vadd.f32 0.0, %v2341
      %v2343 = vpop.f32.mrf.mxu0
      %v2344 = vadd.f32 0.0, %v2343
      %2345 = vmatmul.bf16.gmra.mxu0 %v2258
      %v2346 = vpop.f32.mrf.mxu0
      %v2347 = vadd.f32 0.0, %v2346
      %v2348 = vpop.f32.mrf.mxu0
      %v2349 = vadd.f32 0.0, %v2348
      %2350 = vmatmul.bf16.gmra.mxu0 %v2261
      %v2351 = vpop.f32.mrf.mxu0
      %v2352 = vadd.f32 0.0, %v2351
      %v2353 = vpop.f32.mrf.mxu0
      %v2354 = vadd.f32 0.0, %v2353
      %2355 = vdwg.mxu0
      %vm2356 = vcmask 64512
      %2357 = vst.msk [vmem:[%s177] sm:$0xff] %vm2356, %v2277
      %2358 = vst.msk [vmem:[%s177 + $0x8] sm:$0xff] %vm2356, %v2279
      %2359 = vst.msk [vmem:[%s177 + $0x10] sm:$0xff] %vm2356, %v2282
      %2360 = vst.msk [vmem:[%s177 + $0x18] sm:$0xff] %vm2356, %v2284
      %2361 = vst.msk [vmem:[%s177 + $0x20] sm:$0xff] %vm2356, %v2287
      %2362 = vst.msk [vmem:[%s177 + $0x28] sm:$0xff] %vm2356, %v2289
      %2363 = vst.msk [vmem:[%s177 + $0x30] sm:$0xff] %vm2356, %v2292
      %2364 = vst.msk [vmem:[%s177 + $0x38] sm:$0xff] %vm2356, %v2294
      %2365 = vst.msk [vmem:[%s177 + $0x40] sm:$0xff] %vm2356, %v2297
      %2366 = vst.msk [vmem:[%s177 + $0x48] sm:$0xff] %vm2356, %v2299
      %2367 = vst.msk [vmem:[%s177 + $0x50] sm:$0xff] %vm2356, %v2302
      %2368 = vst.msk [vmem:[%s177 + $0x58] sm:$0xff] %vm2356, %v2304
      %2369 = vst.msk [vmem:[%s177 + $0x60] sm:$0xff] %vm2356, %v2307
      %2370 = vst.msk [vmem:[%s177 + $0x68] sm:$0xff] %vm2356, %v2309
      %2371 = vst.msk [vmem:[%s177 + $0x70] sm:$0xff] %vm2356, %v2312
      %2372 = vst.msk [vmem:[%s177 + $0x78] sm:$0xff] %vm2356, %v2314
      %2373 = vst.msk [vmem:[%s177 + $0x80] sm:$0xff] %vm2356, %v2317
      %2374 = vst.msk [vmem:[%s177 + $0x88] sm:$0xff] %vm2356, %v2319
      %2375 = vst.msk [vmem:[%s177 + $0x90] sm:$0xff] %vm2356, %v2322
      %2376 = vst.msk [vmem:[%s177 + $0x98] sm:$0xff] %vm2356, %v2324
      %2377 = vst.msk [vmem:[%s177 + $0xa0] sm:$0xff] %vm2356, %v2327
      %2378 = vst.msk [vmem:[%s177 + $0xa8] sm:$0xff] %vm2356, %v2329
      %2379 = vst.msk [vmem:[%s177 + $0xb0] sm:$0xff] %vm2356, %v2332
      %2380 = vst.msk [vmem:[%s177 + $0xb8] sm:$0xff] %vm2356, %v2334
      %2381 = vst.msk [vmem:[%s177 + $0xc0] sm:$0xff] %vm2356, %v2337
      %2382 = vst.msk [vmem:[%s177 + $0xc8] sm:$0xff] %vm2356, %v2339
      %2383 = vst.msk [vmem:[%s177 + $0xd0] sm:$0xff] %vm2356, %v2342
      %2384 = vst.msk [vmem:[%s177 + $0xd8] sm:$0xff] %vm2356, %v2344
      %2385 = vst.msk [vmem:[%s177 + $0xe0] sm:$0xff] %vm2356, %v2347
      %2386 = vst.msk [vmem:[%s177 + $0xe8] sm:$0xff] %vm2356, %v2349
      %2387 = vst.msk [vmem:[%s177 + $0xf0] sm:$0xff] %vm2356, %v2352
      %2388 = vst.msk [vmem:[%s177 + $0xf8] sm:$0xff] %vm2356, %v2354
      %v2389 = vsel %vm2356, %v2277, 0.0
      %v2390 = vsel %vm2356, %v2279, 0.0
      %v2391 = vadd.f32 %v2389, %v2390
      %v2392 = vsel %vm2356, %v2282, 0.0
      %v2393 = vadd.f32 %v2391, %v2392
      %v2394 = vsel %vm2356, %v2284, 0.0
      %v2395 = vadd.f32 %v2393, %v2394
      %v2396 = vsel %vm2356, %v2287, 0.0
      %v2397 = vadd.f32 %v2395, %v2396
      %v2398 = vsel %vm2356, %v2289, 0.0
      %v2399 = vadd.f32 %v2397, %v2398
      %v2400 = vsel %vm2356, %v2292, 0.0
      %v2401 = vadd.f32 %v2399, %v2400
      %v2402 = vsel %vm2356, %v2294, 0.0
      %v2403 = vadd.f32 %v2401, %v2402
      %v2404 = vsel %vm2356, %v2297, 0.0
      %v2405 = vadd.f32 %v2403, %v2404
      %v2406 = vsel %vm2356, %v2299, 0.0
      %v2407 = vadd.f32 %v2405, %v2406
      %v2408 = vsel %vm2356, %v2302, 0.0
      %v2409 = vadd.f32 %v2407, %v2408
      %v2410 = vsel %vm2356, %v2304, 0.0
      %v2411 = vadd.f32 %v2409, %v2410
      %v2412 = vsel %vm2356, %v2307, 0.0
      %v2413 = vadd.f32 %v2411, %v2412
      %v2414 = vsel %vm2356, %v2309, 0.0
      %v2415 = vadd.f32 %v2413, %v2414
      %v2416 = vsel %vm2356, %v2312, 0.0
      %v2417 = vadd.f32 %v2415, %v2416
      %v2418 = vsel %vm2356, %v2314, 0.0
      %v2419 = vadd.f32 %v2417, %v2418
      %v2420 = vsel %vm2356, %v2317, 0.0
      %v2421 = vadd.f32 %v2419, %v2420
      %v2422 = vsel %vm2356, %v2319, 0.0
      %v2423 = vadd.f32 %v2421, %v2422
      %v2424 = vsel %vm2356, %v2322, 0.0
      %v2425 = vadd.f32 %v2423, %v2424
      %v2426 = vsel %vm2356, %v2324, 0.0
      %v2427 = vadd.f32 %v2425, %v2426
      %v2428 = vsel %vm2356, %v2327, 0.0
      %v2429 = vadd.f32 %v2427, %v2428
      %v2430 = vsel %vm2356, %v2329, 0.0
      %v2431 = vadd.f32 %v2429, %v2430
      %v2432 = vsel %vm2356, %v2332, 0.0
      %v2433 = vadd.f32 %v2431, %v2432
      %v2434 = vsel %vm2356, %v2334, 0.0
      %v2435 = vadd.f32 %v2433, %v2434
      %v2436 = vsel %vm2356, %v2337, 0.0
      %v2437 = vadd.f32 %v2435, %v2436
      %v2438 = vsel %vm2356, %v2339, 0.0
      %v2439 = vadd.f32 %v2437, %v2438
      %v2440 = vsel %vm2356, %v2342, 0.0
      %v2441 = vadd.f32 %v2439, %v2440
      %v2442 = vsel %vm2356, %v2344, 0.0
      %v2443 = vadd.f32 %v2441, %v2442
      %v2444 = vsel %vm2356, %v2347, 0.0
      %v2445 = vadd.f32 %v2443, %v2444
      %v2446 = vsel %vm2356, %v2349, 0.0
      %v2447 = vadd.f32 %v2445, %v2446
      %v2448 = vsel %vm2356, %v2352, 0.0
      %v2449 = vadd.f32 %v2447, %v2448
      %v2450 = vsel %vm2356, %v2354, 0.0
      %v2451 = vadd.f32 %v2449, %v2450
      %v2452 = vrot.slane %v2451, 4
      %v2453 = vadd.f32 %v2451, %v2452
      %v2454 = vrot.slane %v2453, 2
      %v2455 = vadd.f32 %v2453, %v2454
      %v2456 = vrot.slane %v2455, 1
      %v2457 = vadd.f32 %v2455, %v2456
      %vm2458 = vcmask 57344
      %2459 = vst.msk [vmem:[%s181] sm:$0x1] %vm2458, %v2457
      %v2460 = vmul.f32 %v2277, %v2277
      %v2461 = vmul.f32 %v2279, %v2279
      %v2462 = vmul.f32 %v2282, %v2282
      %v2463 = vmul.f32 %v2284, %v2284
      %v2464 = vmul.f32 %v2287, %v2287
      %v2465 = vmul.f32 %v2289, %v2289
      %v2466 = vmul.f32 %v2292, %v2292
      %v2467 = vmul.f32 %v2294, %v2294
      %v2468 = vmul.f32 %v2297, %v2297
      %v2469 = vmul.f32 %v2299, %v2299
      %v2470 = vmul.f32 %v2302, %v2302
      %v2471 = vmul.f32 %v2304, %v2304
      %v2472 = vmul.f32 %v2307, %v2307
      %v2473 = vmul.f32 %v2309, %v2309
      %v2474 = vmul.f32 %v2312, %v2312
      %v2475 = vmul.f32 %v2314, %v2314
      %v2476 = vmul.f32 %v2317, %v2317
      %v2477 = vmul.f32 %v2319, %v2319
      %v2478 = vmul.f32 %v2322, %v2322
      %v2479 = vmul.f32 %v2324, %v2324
      %v2480 = vmul.f32 %v2327, %v2327
      %v2481 = vmul.f32 %v2329, %v2329
      %v2482 = vmul.f32 %v2332, %v2332
      %v2483 = vmul.f32 %v2334, %v2334
      %v2484 = vmul.f32 %v2337, %v2337
      %v2485 = vmul.f32 %v2339, %v2339
      %v2486 = vmul.f32 %v2342, %v2342
      %v2487 = vmul.f32 %v2344, %v2344
      %v2488 = vmul.f32 %v2347, %v2347
      %v2489 = vmul.f32 %v2349, %v2349
      %v2490 = vmul.f32 %v2352, %v2352
      %v2491 = vmul.f32 %v2354, %v2354
      %v2492 = vsel %vm2356, %v2460, 0.0
      %v2493 = vsel %vm2356, %v2461, 0.0
      %v2494 = vadd.f32 %v2492, %v2493
      %v2495 = vsel %vm2356, %v2462, 0.0
      %v2496 = vadd.f32 %v2494, %v2495
      %v2497 = vsel %vm2356, %v2463, 0.0
      %v2498 = vadd.f32 %v2496, %v2497
      %v2499 = vsel %vm2356, %v2464, 0.0
      %v2500 = vadd.f32 %v2498, %v2499
      %v2501 = vsel %vm2356, %v2465, 0.0
      %v2502 = vadd.f32 %v2500, %v2501
      %v2503 = vsel %vm2356, %v2466, 0.0
      %v2504 = vadd.f32 %v2502, %v2503
      %v2505 = vsel %vm2356, %v2467, 0.0
      %v2506 = vadd.f32 %v2504, %v2505
      %v2507 = vsel %vm2356, %v2468, 0.0
      %v2508 = vadd.f32 %v2506, %v2507
      %v2509 = vsel %vm2356, %v2469, 0.0
      %v2510 = vadd.f32 %v2508, %v2509
      %v2511 = vsel %vm2356, %v2470, 0.0
      %v2512 = vadd.f32 %v2510, %v2511
      %v2513 = vsel %vm2356, %v2471, 0.0
      %v2514 = vadd.f32 %v2512, %v2513
      %v2515 = vsel %vm2356, %v2472, 0.0
      %v2516 = vadd.f32 %v2514, %v2515
      %v2517 = vsel %vm2356, %v2473, 0.0
      %v2518 = vadd.f32 %v2516, %v2517
      %v2519 = vsel %vm2356, %v2474, 0.0
      %v2520 = vadd.f32 %v2518, %v2519
      %v2521 = vsel %vm2356, %v2475, 0.0
      %v2522 = vadd.f32 %v2520, %v2521
      %v2523 = vsel %vm2356, %v2476, 0.0
      %v2524 = vadd.f32 %v2522, %v2523
      %v2525 = vsel %vm2356, %v2477, 0.0
      %v2526 = vadd.f32 %v2524, %v2525
      %v2527 = vsel %vm2356, %v2478, 0.0
      %v2528 = vadd.f32 %v2526, %v2527
      %v2529 = vsel %vm2356, %v2479, 0.0
      %v2530 = vadd.f32 %v2528, %v2529
      %v2531 = vsel %vm2356, %v2480, 0.0
      %v2532 = vadd.f32 %v2530, %v2531
      %v2533 = vsel %vm2356, %v2481, 0.0
      %v2534 = vadd.f32 %v2532, %v2533
      %v2535 = vsel %vm2356, %v2482, 0.0
      %v2536 = vadd.f32 %v2534, %v2535
      %v2537 = vsel %vm2356, %v2483, 0.0
      %v2538 = vadd.f32 %v2536, %v2537
      %v2539 = vsel %vm2356, %v2484, 0.0
      %v2540 = vadd.f32 %v2538, %v2539
      %v2541 = vsel %vm2356, %v2485, 0.0
      %v2542 = vadd.f32 %v2540, %v2541
      %v2543 = vsel %vm2356, %v2486, 0.0
      %v2544 = vadd.f32 %v2542, %v2543
      %v2545 = vsel %vm2356, %v2487, 0.0
      %v2546 = vadd.f32 %v2544, %v2545
      %v2547 = vsel %vm2356, %v2488, 0.0
      %v2548 = vadd.f32 %v2546, %v2547
      %v2549 = vsel %vm2356, %v2489, 0.0
      %v2550 = vadd.f32 %v2548, %v2549
      %v2551 = vsel %vm2356, %v2490, 0.0
      %v2552 = vadd.f32 %v2550, %v2551
      %v2553 = vsel %vm2356, %v2491, 0.0
      %v2554 = vadd.f32 %v2552, %v2553
      %v2555 = vrot.slane %v2554, 4
      %v2556 = vadd.f32 %v2554, %v2555
      %v2557 = vrot.slane %v2556, 2
      %v2558 = vadd.f32 %v2556, %v2557
      %v2559 = vrot.slane %v2558, 1
      %v2560 = vadd.f32 %v2558, %v2559
      %2561 = vst.msk [vmem:[%s181 + $0x1] sm:$0x1] %vm2458, %v2560
      %p2562 = scmp.lt.s32.totalorder %s15, 1
      %s2563 = scalar_select %p2562, %s15, 1
      %s2564 = smul.addr %s2563, 32
      %s2565 = smul.addr %s2564, 8
      %s2566 = scalar_lea.vmem %s2, %s2565
      %p2567 = scmp.lt.s32.totalorder %s15, 1
      %s2568 = scalar_select %p2567, %s15, 1
      %s2569 = smul.addr %s2568, 2
      %s2570 = scalar_lea.vmem %s3, %s2569
      // Predicated region
      $region29: #{block_forward.2} parent=27 // pred_check
        %p2571 = pneg %p80
      $region30: #{block_forward.2} parent=27 // pred_check_branch
        %2573 = sbr.rel (%p2571) target = $region32
      $region31: #{block_forward.2} parent=27 // pred_region
        _
      $region32: #{block_forward.2} parent=27 // pred_fallthru
        _
      // Predicated region
      $region33: #{block_forward.2} parent=27 // pred_check
        %p2574 = pneg %p106
      $region34: #{block_forward.2} parent=27 // pred_check_branch
        %2576 = sbr.rel (%p2574) target = $region36
      $region35: #{block_forward.2} parent=27 // pred_region
        _
      $region36: #{block_forward.2} parent=27 // pred_fallthru
        _
    $region28: #{block_forward.2} parent=5 // pred_fallthru
      _
    %p2577 = scmp.le.s32.totalorder 2, %s10
    // Predicated region
    $region37: #{block_forward.2} parent=5 // pred_check
      %p2578 = pneg %p2577
    $region38: #{block_forward.2} parent=5 // pred_check_branch
      %2580 = sbr.rel (%p2578) target = $region40
    $region39: #{block_forward.2} parent=5 // pred_region
      %s2581 = ssub.s32 %s10, 2
      // Predicated region
      $region41: #{block_forward.2} parent=39 // pred_check
        %p2582 = pneg %p86
      $region42: #{block_forward.2} parent=39 // pred_check_branch
        %2584 = sbr.rel (%p2582) target = $region44
      $region43: #{block_forward.2} parent=39 // pred_region
        %p2585 = scmp.lt.s32.totalorder %s16, 1
        %s2586 = scalar_select %p2585, %s16, 1
        %s2587 = smul.addr %s2586, 32
        %s2588 = smul.addr %s2587, 8
        %s2589 = scalar_lea.vmem %s2, %s2588
      $region44: #{block_forward.2} parent=39 // pred_fallthru
        _
      // Predicated region
      $region45: #{block_forward.2} parent=39 // pred_check
        %p2590 = pneg %p112
      $region46: #{block_forward.2} parent=39 // pred_check_branch
        %2592 = sbr.rel (%p2590) target = $region48
      $region47: #{block_forward.2} parent=39 // pred_region
        %p2593 = scmp.lt.s32.totalorder %s16, 1
        %s2594 = scalar_select %p2593, %s16, 1
        %s2595 = smul.addr %s2594, 2
        %s2596 = scalar_lea.vmem %s3, %s2595
      $region48: #{block_forward.2} parent=39 // pred_fallthru
        _
    $region40: #{block_forward.2} parent=5 // pred_fallthru
      _
  $region6: #{block_forward.2} parent=0 // loop_footer
    %s14 = sadd.s32 1, %s10
  $region7: #{block_forward.2} parent=0 // loop_footer_branch
    %9 = sbr.rel target = $region3
  $region8: #{block_forward.2} parent=0 // loop_exit
    _

</llo_original>
